<compile_context>
chip_gen: v7x
topology: tpu7x:2x2x1
jax: 0.10.0
libtpu: 0.0.40
codegen_flags: <defaults>
</compile_context>

<pallas_src>
import functools

import jax
import jax.numpy as jnp
import numpy as np
from jax import lax
from jax.experimental import pallas as pl
from jax.experimental.pallas import tpu as pltpu


def _cross_attn_kernel(x_ref, ctx_ref, wq_ref, bq_ref, wkv_ref, bkv_ref,
                       out_ref, k_sc, v_sc, *, cout_p):
    # x_ref:   (1, TQ, Cin)      query-token tile of the current batch element
    # ctx_ref: (1, Nc, Cin)      full context of the current batch element
    # wq_ref:  (Cin, Cq)         softmax scale already folded in; bq_ref: (1, Cq)
    # wkv_ref: (Cin, Cout_p+Cq)  [ V (zero-padded to Cout_p) | K ]; bkv_ref: (1, Cout_p+Cq)
    # out_ref: (1, TQ, Cout_p)   lane-dense (Cout_p is a multiple of 128)
    # k_sc:    (Nc, Cq)   bf16 scratch        v_sc: (Nc, Cout_p) bf16 scratch

    # Hoisted fused K/V projection: computed once per batch element (first
    # query tile), kept resident in VMEM scratch for all remaining q tiles.
    @pl.when(pl.program_id(1) == 0)
    def _():
        ctx = ctx_ref[0]                                           # (Nc, Cin)
        kv = (jnp.dot(ctx, wkv_ref[...],
                      preferred_element_type=jnp.float32)
              + bkv_ref[...])                                      # (Nc, Cout_p+Cq)
        # Both slices start on 128-lane boundaries by construction.
        v_sc[...] = kv[:, :cout_p].astype(jnp.bfloat16)
        k_sc[...] = kv[:, cout_p:].astype(jnp.bfloat16)

    x = x_ref[0]                                                   # (TQ, Cin)
    # Q projection (scale folded into wq/bq in the wrapper), f32 accumulate.
    q = (jnp.dot(x, wq_ref[...], preferred_element_type=jnp.float32)
         + bq_ref[...]).astype(jnp.bfloat16)                       # (TQ, Cq)

    # logits[i, j] = q[i, :] . k[j, :]  — contract the last dims of both
    # operands (no transposed K copy); bf16 MXU inputs, f32 accumulation.
    logits = lax.dot_general(
        q, k_sc[...],
        dimension_numbers=(((1,), (1,)), ((), ())),
        preferred_element_type=jnp.float32)                        # (TQ, Nc)

    m = jnp.max(logits, axis=-1, keepdims=True)
    p = jnp.exp(logits - m)
    denom = jnp.sum(p, axis=-1, keepdims=True)
    p = p * pl.reciprocal(denom, approx=True)

    out = jnp.dot(p.astype(jnp.bfloat16), v_sc[...],
                  preferred_element_type=jnp.float32)              # (TQ, Cout_p)
    out_ref[0] = out.astype(out_ref.dtype)


def _pick_tq(nx, nc, budget_bytes=8 * 2 ** 20):
    """Largest query tile (multiple of 8, divides nx, <=512) whose f32
    (TQ, Nc) logits / probability temporaries (~3 live copies) fit budget."""
    cap = budget_bytes // max(1, 3 * 4 * nc)
    cap = int(min(cap, 512, nx))
    cand = (cap // 8) * 8
    while cand >= 8:
        if nx % cand == 0:
            return cand
        cand -= 8
    return nx  # fall back to the full (untileable) query dim


def cross_attention_pallas(x, context, params, *, tq=None):
    """x, context: NCHW float32 arrays. Returns (B, Cout, H, W) matching PyTorch."""
    b, cin, h, w = x.shape
    _, _, hc, wc = context.shape
    nx, nc = h * w, hc * wc

    wq, bq, wk, bk, wv, bv = params
    cq = wq.shape[1]
    cout = wv.shape[1]
    scale = float(cq) ** (-0.5)
    cout_p = ((cout + 127) // 128) * 128          # lane-dense output width

    # Fold the softmax scale into the Q projection (weight AND bias).
    wq_s = wq * scale
    bq_s = bq * scale

    # Fuse K and V projections; pad V to cout_p so both the V slice (offset 0)
    # and the K slice (offset cout_p, a 128-multiple) are lane-aligned.
    if cout_p != cout:
        w_kv = jnp.concatenate(
            [wv, jnp.zeros((cin, cout_p - cout), wv.dtype), wk], axis=1)
        b_kv = jnp.concatenate(
            [bv, jnp.zeros((1, cout_p - cout), bv.dtype), bk], axis=1)
    else:
        w_kv = jnp.concatenate([wv, wk], axis=1)
        b_kv = jnp.concatenate([bv, bk], axis=1)

    # NCHW -> (B, HW, C) (channels-last, token-major).
    x_flat = jnp.transpose(x, (0, 2, 3, 1)).reshape(b, nx, cin)
    ctx_flat = jnp.transpose(context, (0, 2, 3, 1)).reshape(b, nc, cin)

    if tq is None:
        tq = _pick_tq(nx, nc)
    nq = pl.cdiv(nx, tq)

    # Rough VMEM estimate -> explicit scoped limit (capped at 48 MiB: safe on
    # v7x's 64 MiB physical VMEM, above the 16/32 MiB scoped defaults).
    est = 0
    est += 2 * tq * cin * 4                      # x tile (double-buffered)
    est += 2 * nc * cin * 4                      # ctx tile
    est += 2 * (cin * cq + cq) * 4               # wq, bq
    est += 2 * (cin + 1) * (cout_p + cq) * 4     # w_kv, b_kv
    est += 2 * tq * cout_p * 4                   # out tile (double-buffered)
    est += nc * cq * 2 + nc * cout_p * 2         # bf16 K/V scratch
    est += 3 * tq * nc * 4                       # logits / prob temporaries
    est += nc * (cout_p + max(cq, 128)) * 4      # fused-KV projection temp
    vmem_limit = int(min(48 * 2 ** 20, max(32 * 2 ** 20, 2 * est)))

    kernel = functools.partial(_cross_attn_kernel, cout_p=cout_p)

    out_padded = pl.pallas_call(
        kernel,
        out_shape=jax.ShapeDtypeStruct((b, nx, cout_p), jnp.float32),
        grid_spec=pltpu.PrefetchScalarGridSpec(
            num_scalar_prefetch=0,
            grid=(b, nq),
            in_specs=[
                pl.BlockSpec((1, tq, cin), lambda i, j: (i, j, 0)),
                pl.BlockSpec((1, nc, cin), lambda i, j: (i, 0, 0)),
                pl.BlockSpec((cin, cq), lambda i, j: (0, 0)),
                pl.BlockSpec((1, cq), lambda i, j: (0, 0)),
                pl.BlockSpec((cin, cout_p + cq), lambda i, j: (0, 0)),
                pl.BlockSpec((1, cout_p + cq), lambda i, j: (0, 0)),
            ],
            out_specs=pl.BlockSpec((1, tq, cout_p), lambda i, j: (i, j, 0)),
            scratch_shapes=[
                pltpu.VMEM((nc, cq), jnp.bfloat16),       # K (resident per batch elem)
                pltpu.VMEM((nc, cout_p), jnp.bfloat16),   # V (resident per batch elem)
            ],
        ),
        compiler_params=pltpu.CompilerParams(
            # batch axis sharded across TensorCores; q-tile axis must be
            # "arbitrary" because the K/V scratch is carried across it.
            dimension_semantics=("parallel", "arbitrary"),
            vmem_limit_bytes=vmem_limit,
        ),
    )(x_flat, ctx_flat, wq_s, bq_s, w_kv, b_kv)

    out = out_padded[:, :, :cout] if cout_p != cout else out_padded
    # PyTorch does `out.view(b, cout, h, w)` on a contiguous (b, nx, cout)
    # tensor -> raw memory reinterpretation, NOT a transpose.
    return out.reshape(b, cout, h, w)


def init_params(key, in_channels, out_channels, reduction=8):
    """Conv2d(1x1)-equivalent params: W stored as (Cin, Cout), b as (1, Cout)."""
    cq = out_channels // reduction
    ks = jax.random.split(key, 6)
    bound = 1.0 / np.sqrt(in_channels)  # PyTorch Conv2d default init bound (k=1)
    wq = jax.random.uniform(ks[0], (in_channels, cq), jnp.float32, -bound, bound)
    bq = jax.random.uniform(ks[1], (1, cq), jnp.float32, -bound, bound)
    wk = jax.random.uniform(ks[2], (in_channels, cq), jnp.float32, -bound, bound)
    bk = jax.random.uniform(ks[3], (1, cq), jnp.float32, -bound, bound)
    wv = jax.random.uniform(ks[4], (in_channels, out_channels), jnp.float32, -bound, bound)
    bv = jax.random.uniform(ks[5], (1, out_channels), jnp.float32, -bound, bound)
    return (wq, bq, wk, bk, wv, bv)


def _reference(x, context, params):
    """Pure-JAX f32 reference reproducing the PyTorch forward."""
    wq, bq, wk, bk, wv, bv = params
    b, cin, h, w = x.shape
    cq, cout = wq.shape[1], wv.shape[1]
    scale = float(cq) ** (-0.5)
    xf = jnp.transpose(x, (0, 2, 3, 1)).reshape(b, h * w, cin)
    cf = jnp.transpose(context, (0, 2, 3, 1)).reshape(b, -1, cin)
    q = xf @ wq + bq
    k = cf @ wk + bk
    v = cf @ wv + bv
    attn = jax.nn.softmax(jnp.einsum('bqc,bkc->bqk', q, k) * scale, axis=-1)
    out = jnp.einsum('bqk,bkc->bqc', attn, v)
    return out.reshape(b, cout, h, w)


if __name__ == "__main__":
    # Small shapes consistent with the module: B=2, in_channels=4,
    # out_channels=32, reduction=8 (Cq = 4), spatial 16x16 (Nx = Nc = 256).
    B, CIN, COUT, RED, H, W = 2, 4, 32, 8, 16, 16

    key = jax.random.PRNGKey(0)
    kx, kc, kp = jax.random.split(key, 3)
    x = jax.random.normal(kx, (B, CIN, H, W), jnp.float32)
    context = jax.random.normal(kc, (B, CIN, H, W), jnp.float32)
    params = init_params(kp, CIN, COUT, RED)

    # tq=128 -> two query tiles per batch element, exercising the
    # pl.when-hoisted K/V path and the tiled pipeline.
    out = cross_attention_pallas(x, context, params, tq=128)
    out = jax.block_until_ready(out)

    ref = jax.block_until_ready(_reference(x, context, params))
    assert out.shape == (B, COUT, H, W)
    # bf16 MXU operands + approx reciprocal -> relaxed (but tight-for-bf16) tolerance.
    assert np.allclose(np.asarray(out), np.asarray(ref), atol=3e-2, rtol=3e-2), (
        float(np.max(np.abs(np.asarray(out) - np.asarray(ref)))))

    print("KERNEL_OK")
</pallas_src>

<mosaic_0001>
module attributes {stable_mosaic.version = 11 : i64} {
  func.func @_cross_attn_kernel(%arg0: i32, %arg1: i32, %arg2: memref<1x128x4xf32, #tpu.memory_space<vmem>>, %arg3: memref<1x256x4xf32, #tpu.memory_space<vmem>>, %arg4: memref<4x4xf32, #tpu.memory_space<vmem>>, %arg5: memref<1x4xf32, #tpu.memory_space<vmem>>, %arg6: memref<4x132xf32, #tpu.memory_space<vmem>>, %arg7: memref<1x132xf32, #tpu.memory_space<vmem>>, %arg8: memref<1x128x128xf32, #tpu.memory_space<vmem>>, %arg9: memref<256x4xbf16, #tpu.memory_space<vmem>>, %arg10: memref<256x128xbf16, #tpu.memory_space<vmem>>) attributes {dimension_semantics = [#tpu.dimension_semantics<parallel>, #tpu.dimension_semantics<arbitrary>], iteration_bounds = array<i64: 2, 2>, scalar_prefetch = 0 : i64, scratch_operands = 2 : i64, tpu.core_type = #tpu.core_type<tc>, window_params = [{transform_indices = @transform_0, window_bounds = array<i64: 1, 128, 4>}, {transform_indices = @transform_1, window_bounds = array<i64: 1, 256, 4>}, {pipeline_mode = #tpu.pipeline_mode<synchronous>, transform_indices = @transform_2, window_bounds = array<i64: 4, 4>}, {pipeline_mode = #tpu.pipeline_mode<synchronous>, transform_indices = @transform_3, window_bounds = array<i64: 1, 4>}, {pipeline_mode = #tpu.pipeline_mode<synchronous>, transform_indices = @transform_4, window_bounds = array<i64: 4, 132>}, {pipeline_mode = #tpu.pipeline_mode<synchronous>, transform_indices = @transform_5, window_bounds = array<i64: 1, 132>}, {transform_indices = @transform_6, window_bounds = array<i64: 1, 128, 128>}]} {
    %c0_i32 = arith.constant 0 : i32
    %0 = arith.cmpi eq, %arg1, %c0_i32 : i32
    %1 = arith.extui %0 : i1 to i32
    %c0_i32_0 = arith.constant 0 : i32
    %2 = arith.cmpi ne, %1, %c0_i32_0 : i32
    scf.if %2 {
      %c0_18 = arith.constant 0 : index
      %c0_19 = arith.constant 0 : index
      %c0_20 = arith.constant 0 : index
      %29 = vector.load %arg3[%c0_18, %c0_19, %c0_20] : memref<1x256x4xf32, #tpu.memory_space<vmem>>, vector<1x256x4xf32>
      %30 = vector.shape_cast %29 : vector<1x256x4xf32> to vector<256x4xf32>
      %c0_21 = arith.constant 0 : index
      %c0_22 = arith.constant 0 : index
      %31 = vector.load %arg6[%c0_21, %c0_22] : memref<4x132xf32, #tpu.memory_space<vmem>>, vector<4x132xf32>
      %cst_23 = arith.constant dense<0.000000e+00> : vector<256x132xf32>
      %32 = tpu.matmul %30, %31, %cst_23 {dimension_numbers = #tpu.dot_dimension_numbers<[1], [0], [0], [1], [0, 0, 1, 1], [], []>} : vector<256x4xf32>, vector<4x132xf32>, vector<256x132xf32> -> vector<256x132xf32>
      %c0_24 = arith.constant 0 : index
      %c0_25 = arith.constant 0 : index
      %33 = vector.load %arg7[%c0_24, %c0_25] : memref<1x132xf32, #tpu.memory_space<vmem>>, vector<1x132xf32>
      %34 = vector.broadcast %33 : vector<1x132xf32> to vector<256x132xf32>
      %35 = arith.addf %32, %34 : vector<256x132xf32>
      %36 = vector.extract_strided_slice %35 {offsets = [0, 0], sizes = [256, 128], strides = [1, 1]} : vector<256x132xf32> to vector<256x128xf32>
      %37 = arith.truncf %36 : vector<256x128xf32> to vector<256x128xbf16>
      %c0_26 = arith.constant 0 : index
      %c0_27 = arith.constant 0 : index
      %38 = vector.load %arg10[%c0_26, %c0_27] : memref<256x128xbf16, #tpu.memory_space<vmem>>, vector<256x128xbf16>
      tpu.vector_store %arg10[%c0_26, %c0_27], %37 {strides = array<i32>} : memref<256x128xbf16, #tpu.memory_space<vmem>>, vector<256x128xbf16>,
      %39 = vector.extract_strided_slice %35 {offsets = [0, 128], sizes = [256, 4], strides = [1, 1]} : vector<256x132xf32> to vector<256x4xf32>
      %40 = arith.truncf %39 : vector<256x4xf32> to vector<256x4xbf16>
      %c0_28 = arith.constant 0 : index
      %c0_29 = arith.constant 0 : index
      %41 = vector.load %arg9[%c0_28, %c0_29] : memref<256x4xbf16, #tpu.memory_space<vmem>>, vector<256x4xbf16>
      tpu.vector_store %arg9[%c0_28, %c0_29], %40 {strides = array<i32>} : memref<256x4xbf16, #tpu.memory_space<vmem>>, vector<256x4xbf16>,
    } else {
    }
    %c0 = arith.constant 0 : index
    %c0_1 = arith.constant 0 : index
    %c0_2 = arith.constant 0 : index
    %3 = vector.load %arg2[%c0, %c0_1, %c0_2] : memref<1x128x4xf32, #tpu.memory_space<vmem>>, vector<1x128x4xf32>
    %4 = vector.shape_cast %3 : vector<1x128x4xf32> to vector<128x4xf32>
    %c0_3 = arith.constant 0 : index
    %c0_4 = arith.constant 0 : index
    %5 = vector.load %arg4[%c0_3, %c0_4] : memref<4x4xf32, #tpu.memory_space<vmem>>, vector<4x4xf32>
    %cst = arith.constant dense<0.000000e+00> : vector<128x4xf32>
    %6 = tpu.matmul %4, %5, %cst {dimension_numbers = #tpu.dot_dimension_numbers<[1], [0], [0], [1], [0, 0, 1, 1], [], []>} : vector<128x4xf32>, vector<4x4xf32>, vector<128x4xf32> -> vector<128x4xf32>
    %c0_5 = arith.constant 0 : index
    %c0_6 = arith.constant 0 : index
    %7 = vector.load %arg5[%c0_5, %c0_6] : memref<1x4xf32, #tpu.memory_space<vmem>>, vector<1x4xf32>
    %8 = vector.broadcast %7 : vector<1x4xf32> to vector<128x4xf32>
    %9 = arith.addf %6, %8 : vector<128x4xf32>
    %10 = arith.truncf %9 : vector<128x4xf32> to vector<128x4xbf16>
    %c0_7 = arith.constant 0 : index
    %c0_8 = arith.constant 0 : index
    %11 = vector.load %arg9[%c0_7, %c0_8] : memref<256x4xbf16, #tpu.memory_space<vmem>>, vector<256x4xbf16>
    %cst_9 = arith.constant dense<0.000000e+00> : vector<128x256xf32>
    %12 = tpu.matmul %10, %11, %cst_9 {dimension_numbers = #tpu.dot_dimension_numbers<[1], [1], [0], [0], [0, 0, 1, 0], [], []>} : vector<128x4xbf16>, vector<256x4xbf16>, vector<128x256xf32> -> vector<128x256xf32>
    %cst_10 = arith.constant dense<0xFF800000> : vector<128xf32>
    %13 = vector.multi_reduction <maximumf>, %12, %cst_10 [1] : vector<128x256xf32> to vector<128xf32>
    %14 = vector.shape_cast %13 : vector<128xf32> to vector<128x1xf32>
    %15 = vector.broadcast %14 : vector<128x1xf32> to vector<128x256xf32>
    %16 = arith.subf %12, %15 : vector<128x256xf32>
    %17 = math.exp %16 : vector<128x256xf32>
    %cst_11 = arith.constant dense<0.000000e+00> : vector<128xf32>
    %18 = vector.multi_reduction <add>, %17, %cst_11 [1] : vector<128x256xf32> to vector<128xf32>
    %19 = vector.shape_cast %18 : vector<128xf32> to vector<128x1xf32>
    %20 = tpu.reciprocal %19 {approx = true} : vector<128x1xf32> -> vector<128x1xf32>
    %21 = vector.broadcast %20 : vector<128x1xf32> to vector<128x256xf32>
    %22 = arith.mulf %17, %21 : vector<128x256xf32>
    %23 = arith.truncf %22 : vector<128x256xf32> to vector<128x256xbf16>
    %c0_12 = arith.constant 0 : index
    %c0_13 = arith.constant 0 : index
    %24 = vector.load %arg10[%c0_12, %c0_13] : memref<256x128xbf16, #tpu.memory_space<vmem>>, vector<256x128xbf16>
    %cst_14 = arith.constant dense<0.000000e+00> : vector<128x128xf32>
    %25 = tpu.matmul %23, %24, %cst_14 {dimension_numbers = #tpu.dot_dimension_numbers<[1], [0], [0], [1], [0, 0, 1, 1], [], []>} : vector<128x256xbf16>, vector<256x128xbf16>, vector<128x128xf32> -> vector<128x128xf32>
    %c0_15 = arith.constant 0 : index
    %c0_16 = arith.constant 0 : index
    %c0_17 = arith.constant 0 : index
    %26 = vector.load %arg8[%c0_15, %c0_16, %c0_17] : memref<1x128x128xf32, #tpu.memory_space<vmem>>, vector<1x128x128xf32>
    %27 = vector.shape_cast %26 : vector<1x128x128xf32> to vector<128x128xf32>
    %28 = vector.shape_cast %25 : vector<128x128xf32> to vector<1x128x128xf32>
    tpu.vector_store %arg8[%c0_15, %c0_16, %c0_17], %28 {strides = array<i32>} : memref<1x128x128xf32, #tpu.memory_space<vmem>>, vector<1x128x128xf32>,
    return
  }
  func.func @transform_0(%arg0: i32, %arg1: i32) -> (i32, i32, i32) {
    %c0_i32 = arith.constant 0 : i32
    %c0_i32_0 = arith.constant 0 : i32
    return %arg0, %arg1, %c0_i32 : i32, i32, i32
  }
  func.func @transform_1(%arg0: i32, %arg1: i32) -> (i32, i32, i32) {
    %c0_i32 = arith.constant 0 : i32
    %c0_i32_0 = arith.constant 0 : i32
    %c0_i32_1 = arith.constant 0 : i32
    return %arg0, %c0_i32, %c0_i32_0 : i32, i32, i32
  }
  func.func @transform_2(%arg0: i32, %arg1: i32) -> (i32, i32) {
    %c0_i32 = arith.constant 0 : i32
    %c0_i32_0 = arith.constant 0 : i32
    %c0_i32_1 = arith.constant 0 : i32
    return %c0_i32, %c0_i32_0 : i32, i32
  }
  func.func @transform_3(%arg0: i32, %arg1: i32) -> (i32, i32) {
    %c0_i32 = arith.constant 0 : i32
    %c0_i32_0 = arith.constant 0 : i32
    %c0_i32_1 = arith.constant 0 : i32
    return %c0_i32, %c0_i32_0 : i32, i32
  }
  func.func @transform_4(%arg0: i32, %arg1: i32) -> (i32, i32) {
    %c0_i32 = arith.constant 0 : i32
    %c0_i32_0 = arith.constant 0 : i32
    %c0_i32_1 = arith.constant 0 : i32
    return %c0_i32, %c0_i32_0 : i32, i32
  }
  func.func @transform_5(%arg0: i32, %arg1: i32) -> (i32, i32) {
    %c0_i32 = arith.constant 0 : i32
    %c0_i32_0 = arith.constant 0 : i32
    %c0_i32_1 = arith.constant 0 : i32
    return %c0_i32, %c0_i32_0 : i32, i32
  }
  func.func @transform_6(%arg0: i32, %arg1: i32) -> (i32, i32, i32) {
    %c0_i32 = arith.constant 0 : i32
    %c0_i32_0 = arith.constant 0 : i32
    return %arg0, %arg1, %c0_i32 : i32, i32, i32
  }
}

</mosaic_0001>

<llo_original>
// kernel: tpu_custom_call.1
$region0: #{tpu_custom_call.1}
  #allocation0 [shape = 'u32[]', space=smem, size = 0x4, offset = 0x4, fixed_abs, tag = 'smem constant byte address 0x4 - core index']
  #allocation1 [shape = 'u32[144,128]{1,0:T(1,128)}', space=vmem, size = 0x12000, scoped, tag = 'internal scratch']
  #allocation2 [shape = 'bf16[256,4]{1,0:T(16,128)(2,1)}', space=vmem, size = 0x10000, scoped, tag = 'scratch operand']
  #allocation3 [shape = 'bf16[256,128]{1,0:T(16,128)(2,1)}', space=vmem, size = 0x10000, scoped, tag = 'scratch operand']
  %s0 = inlined_call_operand.vmem [shape: f32[2,256,4], index: 0, kind: input, shape index: {}]
  %s1 = inlined_call_operand.vmem [shape: f32[2,256,4], index: 1, kind: input, shape index: {}]
  %s2 = inlined_call_operand.vmem [shape: f32[4,4], index: 2, kind: input, shape index: {}]
  %s3 = inlined_call_operand.vmem [shape: f32[1,4], index: 3, kind: input, shape index: {}]
  %s4 = inlined_call_operand.vmem [shape: f32[4,132], index: 4, kind: input, shape index: {}]
  %s5 = inlined_call_operand.vmem [shape: f32[1,132], index: 5, kind: input, shape index: {}]
  %s6 = inlined_call_operand.hbm [shape: f32[2,256,128], index: 6, kind: output, shape index: {}]
  %s7 = sld [smem:[#allocation0]]
  $region61: #{tpu_custom_call.1} parent=0
    _
  %s9 = ssub.s32 1, %s7
  %s10 = scalar_select 0, %s9, %s7
  $region1: #{tpu_custom_call.1} parent=0
    #allocation4 [shape = 'u8[131072]{0}', space=vmem, size = 0x20000, scoped, tag = 'output window, operand 0']
    #allocation5 [shape = 's32[2]{0}', space=sflag, size = 0x8, scoped, tag = 'scoped memory for tpu_custom_call.1']
    %11 = vsyncpa [#allocation5], 0
    %s12 = scalar_lea.sflag [#allocation5], 1
    %13 = vsyncpa %s12, 0
    loop: start=0, step=1, limit=6
    $region2: #{tpu_custom_call.1} parent=1 // loop_pre_header
      _
    $region3: #{tpu_custom_call.1} parent=1 // loop_header
      %s15 = sphi 0, %s19
      %p16 = scmp.ge.s32.totalorder %s15, 6
      %s22 = sphi 0, %s34
      %s23 = sphi 0, %s30
      %s24 = sphi 0, %s22
      %s25 = sphi 0, %s23
      %s26 = sphi 0, %s24
      %s27 = sphi 0, %s25
      %s39 = sphi 0, %s41
      %s42 = sphi 0, %s39
      %s43 = sphi 0, %s42
      %s59 = sphi 0, %s43
      %s65 = sphi 0, %s67
      %s68 = sphi 0, %s65
      %s69 = sphi 0, %s68
      %s85 = sphi 0, %s69
      %s89 = sphi 0, %s89
      %s91 = sphi 0, %s89
      %s92 = sphi 0, %s91
      %s106 = sphi 0, %s92
      %s110 = sphi 0, %s110
      %s112 = sphi 0, %s110
      %s113 = sphi 0, %s112
      %s127 = sphi 0, %s113
      %s131 = sphi 0, %s131
      %s133 = sphi 0, %s131
      %s134 = sphi 0, %s133
      %s148 = sphi 0, %s134
      %s152 = sphi 0, %s152
      %s154 = sphi 0, %s152
      %s155 = sphi 0, %s154
      %s169 = sphi 0, %s155
      %s177 = sphi 0, %s179
      %s180 = sphi 0, %s177
      %s181 = sphi 0, %s180
      %s197 = sphi 0, %s181
    $region4: #{tpu_custom_call.1} parent=1 // loop_header_branch
      %18 = sbr.rel (%p16) target = $region8
    $region5: #{tpu_custom_call.1} parent=1 // loop_body
      %s20 = ssub.s32 %s15, 1
      %s21 = ssub.s32 %s15, 2
      %s28 = sadd.s32 1, %s23
      %p29 = scmp.ge.s32.totalorder %s28, 2
      %s30 = scalar_select %p29, 0, %s28
      %s31 = sadd.s32 1, %s22
      %s32 = scalar_select %p29, %s31, %s22
      %p33 = scmp.ge.s32.totalorder %s32, 2
      %s34 = scalar_select %p33, 0, %s32
      %s35 = ssub.s32 %s22, %s34
      %s36 = ssub.s32 %s23, %s30
      %s37 = sor.u32 %s35, %s36
      %p38 = scmp.eq.s32.totalorder %s37, 0
      %s40 = sadd.s32 %s39, 1
      %s41 = scalar_select %p38, %s39, %s40
      %p44 = pneg %p38
      %p45 = scmp.eq.s32.totalorder %s15, 3
      %p46 = por %p44, %p45
      %p47 = scmp.ne.s32.totalorder %s39, %s42
      %p48 = scmp.eq.s32.totalorder %s15, 0
      %p49 = por %p47, %p48
      %p50 = scmp.ne.s32.totalorder %s39, %s42
      %p51 = scmp.eq.s32.totalorder %s20, 3
      %p52 = por %p50, %p51
      %p53 = scmp.ne.s32.totalorder %s42, %s43
      %p54 = scmp.eq.s32.totalorder %s20, 0
      %p55 = por %p53, %p54
      %p56 = scmp.ne.s32.totalorder %s42, %s43
      %p57 = scmp.eq.s32.totalorder %s21, 3
      %p58 = por %p56, %p57
      %p60 = scmp.ne.s32.totalorder %s43, %s59
      %p61 = scmp.eq.s32.totalorder %s21, 0
      %p62 = por %p60, %p61
      %s63 = ssub.s32 %s22, %s34
      %p64 = scmp.eq.s32.totalorder %s63, 0
      %s66 = sadd.s32 %s65, 1
      %s67 = scalar_select %p64, %s65, %s66
      %p70 = pneg %p64
      %p71 = scmp.eq.s32.totalorder %s15, 3
      %p72 = por %p70, %p71
      %p73 = scmp.ne.s32.totalorder %s65, %s68
      %p74 = scmp.eq.s32.totalorder %s15, 0
      %p75 = por %p73, %p74
      %p76 = scmp.ne.s32.totalorder %s65, %s68
      %p77 = scmp.eq.s32.totalorder %s20, 3
      %p78 = por %p76, %p77
      %p79 = scmp.ne.s32.totalorder %s68, %s69
      %p80 = scmp.eq.s32.totalorder %s20, 0
      %p81 = por %p79, %p80
      %p82 = scmp.ne.s32.totalorder %s68, %s69
      %p83 = scmp.eq.s32.totalorder %s21, 3
      %p84 = por %p82, %p83
      %p86 = scmp.ne.s32.totalorder %s69, %s85
      %p87 = scmp.eq.s32.totalorder %s21, 0
      %p88 = por %p86, %p87
      %s90 = sadd.s32 %s89, 1
      %p93 = scmp.eq.s32.totalorder %s15, 3
      %p94 = scmp.ne.s32.totalorder %s89, %s91
      %p95 = scmp.eq.s32.totalorder %s15, 0
      %p96 = por %p94, %p95
      %p97 = scmp.ne.s32.totalorder %s89, %s91
      %p98 = scmp.eq.s32.totalorder %s20, 3
      %p99 = por %p97, %p98
      %p100 = scmp.ne.s32.totalorder %s91, %s92
      %p101 = scmp.eq.s32.totalorder %s20, 0
      %p102 = por %p100, %p101
      %p103 = scmp.ne.s32.totalorder %s91, %s92
      %p104 = scmp.eq.s32.totalorder %s21, 3
      %p105 = por %p103, %p104
      %p107 = scmp.ne.s32.totalorder %s92, %s106
      %p108 = scmp.eq.s32.totalorder %s21, 0
      %p109 = por %p107, %p108
      %s111 = sadd.s32 %s110, 1
      %p114 = scmp.eq.s32.totalorder %s15, 3
      %p115 = scmp.ne.s32.totalorder %s110, %s112
      %p116 = scmp.eq.s32.totalorder %s15, 0
      %p117 = por %p115, %p116
      %p118 = scmp.ne.s32.totalorder %s110, %s112
      %p119 = scmp.eq.s32.totalorder %s20, 3
      %p120 = por %p118, %p119
      %p121 = scmp.ne.s32.totalorder %s112, %s113
      %p122 = scmp.eq.s32.totalorder %s20, 0
      %p123 = por %p121, %p122
      %p124 = scmp.ne.s32.totalorder %s112, %s113
      %p125 = scmp.eq.s32.totalorder %s21, 3
      %p126 = por %p124, %p125
      %p128 = scmp.ne.s32.totalorder %s113, %s127
      %p129 = scmp.eq.s32.totalorder %s21, 0
      %p130 = por %p128, %p129
      %s132 = sadd.s32 %s131, 1
      %p135 = scmp.eq.s32.totalorder %s15, 3
      %p136 = scmp.ne.s32.totalorder %s131, %s133
      %p137 = scmp.eq.s32.totalorder %s15, 0
      %p138 = por %p136, %p137
      %p139 = scmp.ne.s32.totalorder %s131, %s133
      %p140 = scmp.eq.s32.totalorder %s20, 3
      %p141 = por %p139, %p140
      %p142 = scmp.ne.s32.totalorder %s133, %s134
      %p143 = scmp.eq.s32.totalorder %s20, 0
      %p144 = por %p142, %p143
      %p145 = scmp.ne.s32.totalorder %s133, %s134
      %p146 = scmp.eq.s32.totalorder %s21, 3
      %p147 = por %p145, %p146
      %p149 = scmp.ne.s32.totalorder %s134, %s148
      %p150 = scmp.eq.s32.totalorder %s21, 0
      %p151 = por %p149, %p150
      %s153 = sadd.s32 %s152, 1
      %p156 = scmp.eq.s32.totalorder %s15, 3
      %p157 = scmp.ne.s32.totalorder %s152, %s154
      %p158 = scmp.eq.s32.totalorder %s15, 0
      %p159 = por %p157, %p158
      %p160 = scmp.ne.s32.totalorder %s152, %s154
      %p161 = scmp.eq.s32.totalorder %s20, 3
      %p162 = por %p160, %p161
      %p163 = scmp.ne.s32.totalorder %s154, %s155
      %p164 = scmp.eq.s32.totalorder %s20, 0
      %p165 = por %p163, %p164
      %p166 = scmp.ne.s32.totalorder %s154, %s155
      %p167 = scmp.eq.s32.totalorder %s21, 3
      %p168 = por %p166, %p167
      %p170 = scmp.ne.s32.totalorder %s155, %s169
      %p171 = scmp.eq.s32.totalorder %s21, 0
      %p172 = por %p170, %p171
      %s173 = ssub.s32 %s22, %s34
      %s174 = ssub.s32 %s23, %s30
      %s175 = sor.u32 %s173, %s174
      %p176 = scmp.eq.s32.totalorder %s175, 0
      %s178 = sadd.s32 %s177, 1
      %s179 = scalar_select %p176, %s177, %s178
      %p182 = pneg %p176
      %p183 = scmp.eq.s32.totalorder %s15, 3
      %p184 = por %p182, %p183
      %p185 = scmp.ne.s32.totalorder %s177, %s180
      %p186 = scmp.eq.s32.totalorder %s15, 0
      %p187 = por %p185, %p186
      %p188 = scmp.ne.s32.totalorder %s177, %s180
      %p189 = scmp.eq.s32.totalorder %s20, 3
      %p190 = por %p188, %p189
      %p191 = scmp.ne.s32.totalorder %s180, %s181
      %p192 = scmp.eq.s32.totalorder %s20, 0
      %p193 = por %p191, %p192
      %p194 = scmp.ne.s32.totalorder %s180, %s181
      %p195 = scmp.eq.s32.totalorder %s21, 3
      %p196 = por %p194, %p195
      %p198 = scmp.ne.s32.totalorder %s181, %s197
      %p199 = scmp.eq.s32.totalorder %s21, 0
      %p200 = por %p198, %p199
      %p201 = scmp.le.s32.totalorder 1, %s15
      %p202 = scmp.lt.s32.totalorder %s15, 5
      %p203 = pnand %p201, %p202
      %p204 = pneg %p203
      // Predicated region
      $region9: #{tpu_custom_call.1} parent=5 // pred_check
        _
      $region10: #{tpu_custom_call.1} parent=5 // pred_check_branch
        %206 = sbr.rel (%p203) target = $region12
      $region11: #{tpu_custom_call.1} parent=5 // pred_region
        %s207 = ssub.s32 %s15, 1
        // Predicated region
        $region13: #{tpu_custom_call.1} parent=11 // pred_check
          %p208 = pneg %p102
        $region14: #{tpu_custom_call.1} parent=11 // pred_check_branch
          %210 = sbr.rel (%p208) target = $region16
        $region15: #{tpu_custom_call.1} parent=11 // pred_region
          _
        $region16: #{tpu_custom_call.1} parent=11 // pred_fallthru
          _
        // Predicated region
        $region17: #{tpu_custom_call.1} parent=11 // pred_check
          %p211 = pneg %p123
        $region18: #{tpu_custom_call.1} parent=11 // pred_check_branch
          %213 = sbr.rel (%p211) target = $region20
        $region19: #{tpu_custom_call.1} parent=11 // pred_region
          _
        $region20: #{tpu_custom_call.1} parent=11 // pred_fallthru
          _
        // Predicated region
        $region21: #{tpu_custom_call.1} parent=11 // pred_check
          %p214 = pneg %p144
        $region22: #{tpu_custom_call.1} parent=11 // pred_check_branch
          %216 = sbr.rel (%p214) target = $region24
        $region23: #{tpu_custom_call.1} parent=11 // pred_region
          _
        $region24: #{tpu_custom_call.1} parent=11 // pred_fallthru
          _
        // Predicated region
        $region25: #{tpu_custom_call.1} parent=11 // pred_check
          %p217 = pneg %p165
        $region26: #{tpu_custom_call.1} parent=11 // pred_check_branch
          %219 = sbr.rel (%p217) target = $region28
        $region27: #{tpu_custom_call.1} parent=11 // pred_region
          _
        $region28: #{tpu_custom_call.1} parent=11 // pred_fallthru
          _
      $region12: #{tpu_custom_call.1} parent=5 // pred_fallthru
        _
      %p220 = scmp.lt.s32.totalorder %s15, 4
      // Predicated region
      $region29: #{tpu_custom_call.1} parent=5 // pred_check
        %p221 = pneg %p220
      $region30: #{tpu_custom_call.1} parent=5 // pred_check_branch
        %223 = sbr.rel (%p221) target = $region32
      $region31: #{tpu_custom_call.1} parent=5 // pred_region
        // Predicated region
        $region33: #{tpu_custom_call.1} parent=31 // pred_check
          %p224 = pneg %p49
        $region34: #{tpu_custom_call.1} parent=31 // pred_check_branch
          %226 = sbr.rel (%p224) target = $region36
        $region35: #{tpu_custom_call.1} parent=31 // pred_region
          %s227 = smul.u32 16, %s23
          %p228 = scmp.lt.s32.totalorder %s22, 1
          %s229 = scalar_select %p228, %s22, 1
          %p230 = scmp.lt.s32.totalorder %s227, 31
          %s231 = scalar_select %p230, %s227, 31
          %s232 = smul.addr %s229, 32
          %s233 = sadd.s32 %s231, %s232
          %s234 = smul.addr %s233, 8
          %s235 = scalar_lea.vmem %s0, %s234
          %s236 = smul.u32 16, %s23
        $region36: #{tpu_custom_call.1} parent=31 // pred_fallthru
          _
        // Predicated region
        $region37: #{tpu_custom_call.1} parent=31 // pred_check
          %p237 = pneg %p75
        $region38: #{tpu_custom_call.1} parent=31 // pred_check_branch
          %239 = sbr.rel (%p237) target = $region40
        $region39: #{tpu_custom_call.1} parent=31 // pred_region
          %p240 = scmp.lt.s32.totalorder %s22, 1
          %s241 = scalar_select %p240, %s22, 1
          %s242 = smul.addr %s241, 32
          %s243 = smul.addr %s242, 8
          %s244 = scalar_lea.vmem %s1, %s243
        $region40: #{tpu_custom_call.1} parent=31 // pred_fallthru
          _
      $region32: #{tpu_custom_call.1} parent=5 // pred_fallthru
        _
      %p245 = scmp.le.s32.totalorder 1, %s15
      %p246 = scmp.lt.s32.totalorder %s15, 5
      %p247 = pnand %p245, %p246
      %p248 = pneg %p247
      // Predicated region
      $region41: #{tpu_custom_call.1} parent=5 // pred_check
        _
      $region42: #{tpu_custom_call.1} parent=5 // pred_check_branch
        %250 = sbr.rel (%p247) target = $region44
      $region43: #{tpu_custom_call.1} parent=5 // pred_region
        %s251 = ssub.s32 %s15, 1
        %s252 = smul.u32 16, %s25
        %p253 = scmp.lt.s32.totalorder %s24, 1
        %s254 = scalar_select %p253, %s24, 1
        %p255 = scmp.lt.s32.totalorder %s252, 31
        %s256 = scalar_select %p255, %s252, 31
        %s257 = smul.addr %s254, 32
        %s258 = sadd.s32 %s256, %s257
        %s259 = smul.addr %s258, 8
        %s260 = scalar_lea.vmem %s0, %s259
        %p261 = pneg %p55
        %p262 = pneg %p52
        %p263 = scmp.lt.s32.totalorder %s24, 1
        %s264 = scalar_select %p263, %s24, 1
        %s265 = smul.addr %s264, 32
        %s266 = smul.addr %s265, 8
        %s267 = scalar_lea.vmem %s1, %s266
        %p268 = pneg %p81
        %p269 = pneg %p78
        %p270 = pneg %p102
        %p271 = pneg %p99
        %p272 = pneg %p123
        %p273 = pneg %p120
        %p274 = pneg %p144
        %p275 = pneg %p141
        %p276 = pneg %p165
        %p277 = pneg %p162
        %p278 = pneg %p193
        %p279 = pneg %p190
        %s280 = sand.u32 %s180, 1
        %s281 = scalar_lea.sflag [#allocation5], %s280
        %s282 = sand.u32 %s180, 1
        %s283 = smul.addr %s282, 128
        %s284 = scalar_lea.vmem [#allocation4], %s283
        %s285 = smul.u32 16, %s25
        %p286 = scmp.lt.s32.totalorder %s24, 1
        %s287 = scalar_select %p286, %s24, 1
        %p288 = scmp.lt.s32.totalorder %s285, 31
        %s289 = scalar_select %p288, %s285, 31
        %s290 = smul.addr %s287, 32
        %s291 = sadd.s32 %s289, %s290
        %s292 = smul.addr %s291, 8
        %s293 = scalar_lea.vmem %s0, %s292
        %s294 = smul.u32 16, %s25
        %p295 = scmp.lt.s32.totalorder %s24, 1
        %s296 = scalar_select %p295, %s24, 1
        %s297 = smul.addr %s296, 32
        %s298 = smul.addr %s297, 8
        %s299 = scalar_lea.vmem %s1, %s298
        %s300 = smul.u32 16, %s25
        %p302 = scmp.eq.s32.totalorder %s25, 0
        // Predicated region
        $region45: #{tpu_custom_call.1} parent=43 // pred_check
          %p303 = pneg %p302
        $region46: #{tpu_custom_call.1} parent=43 // pred_check_branch
          %305 = sbr.rel (%p303) target = $region48
        $region47: #{tpu_custom_call.1} parent=43 // pred_region
          %v306 = vld [vmem:[%s299] sm:$0xff]
          %v307 = vld [vmem:[%s299 + $0x8] sm:$0xff]
          %v308 = vld [vmem:[%s299 + $0x10] sm:$0xff]
          %v309 = vld [vmem:[%s299 + $0x18] sm:$0xff]
          %v310 = vld [vmem:[%s299 + $0x20] sm:$0xff]
          %v311 = vld [vmem:[%s299 + $0x28] sm:$0xff]
          %v312 = vld [vmem:[%s299 + $0x30] sm:$0xff]
          %v313 = vld [vmem:[%s299 + $0x38] sm:$0xff]
          %v314 = vld [vmem:[%s299 + $0x40] sm:$0xff]
          %v315 = vld [vmem:[%s299 + $0x48] sm:$0xff]
          %v316 = vld [vmem:[%s299 + $0x50] sm:$0xff]
          %v317 = vld [vmem:[%s299 + $0x58] sm:$0xff]
          %v318 = vld [vmem:[%s299 + $0x60] sm:$0xff]
          %v319 = vld [vmem:[%s299 + $0x68] sm:$0xff]
          %v320 = vld [vmem:[%s299 + $0x70] sm:$0xff]
          %v321 = vld [vmem:[%s299 + $0x78] sm:$0xff]
          %v322 = vld [vmem:[%s299 + $0x80] sm:$0xff]
          %v323 = vld [vmem:[%s299 + $0x88] sm:$0xff]
          %v324 = vld [vmem:[%s299 + $0x90] sm:$0xff]
          %v325 = vld [vmem:[%s299 + $0x98] sm:$0xff]
          %v326 = vld [vmem:[%s299 + $0xa0] sm:$0xff]
          %v327 = vld [vmem:[%s299 + $0xa8] sm:$0xff]
          %v328 = vld [vmem:[%s299 + $0xb0] sm:$0xff]
          %v329 = vld [vmem:[%s299 + $0xb8] sm:$0xff]
          %v330 = vld [vmem:[%s299 + $0xc0] sm:$0xff]
          %v331 = vld [vmem:[%s299 + $0xc8] sm:$0xff]
          %v332 = vld [vmem:[%s299 + $0xd0] sm:$0xff]
          %v333 = vld [vmem:[%s299 + $0xd8] sm:$0xff]
          %v334 = vld [vmem:[%s299 + $0xe0] sm:$0xff]
          %v335 = vld [vmem:[%s299 + $0xe8] sm:$0xff]
          %v336 = vld [vmem:[%s299 + $0xf0] sm:$0xff]
          %v337 = vld [vmem:[%s299 + $0xf8] sm:$0xff]
          %v338 = vld [vmem:[%s4] sm:$0xff]
          %v339 = vld [vmem:[%s5] sm:$0x3]
          %v341 = vlaneseq
          %v342 = vshrl.u32 %v341, 7
          %v343 = vsub.s32 0, %v342
          %v344 = vrot.slane %v339, %v343
          %v345 = vlaneseq
          %v346 = vshrl.u32 %v345, 7
          %v347 = vsub.s32 1, %v346
          %v348 = vrot.slane %v339, %v347
          %v352 = vcombine.high %v338, %v338
          %vm353 = vcmask 31744
          %v355 = vsel %vm353, %v306, 0
          %v358 = vsel %vm353, %v307, 0
          %v361 = vsel %vm353, %v308, 0
          %v364 = vsel %vm353, %v309, 0
          %v367 = vsel %vm353, %v310, 0
          %v370 = vsel %vm353, %v311, 0
          %v373 = vsel %vm353, %v312, 0
          %v376 = vsel %vm353, %v313, 0
          %v379 = vsel %vm353, %v314, 0
          %v382 = vsel %vm353, %v315, 0
          %v385 = vsel %vm353, %v316, 0
          %v388 = vsel %vm353, %v317, 0
          %v391 = vsel %vm353, %v318, 0
          %v394 = vsel %vm353, %v319, 0
          %v397 = vsel %vm353, %v320, 0
          %v400 = vsel %vm353, %v321, 0
          %v403 = vsel %vm353, %v322, 0
          %v406 = vsel %vm353, %v323, 0
          %v409 = vsel %vm353, %v324, 0
          %v412 = vsel %vm353, %v325, 0
          %v415 = vsel %vm353, %v326, 0
          %v418 = vsel %vm353, %v327, 0
          %v421 = vsel %vm353, %v328, 0
          %v424 = vsel %vm353, %v329, 0
          %v427 = vsel %vm353, %v330, 0
          %v430 = vsel %vm353, %v331, 0
          %v433 = vsel %vm353, %v332, 0
          %v436 = vsel %vm353, %v333, 0
          %v439 = vsel %vm353, %v334, 0
          %v442 = vsel %vm353, %v335, 0
          %v445 = vsel %vm353, %v336, 0
          %v448 = vsel %vm353, %v337, 0
          %vm450 = vcmask 1043456
          %v451 = vsel %vm450, %v338, 0
          %v453 = vsel %vm450, %v352, 0
          %455 = vmatprep.subr.mxu0 %v453
          %456 = vmatpush1.msra.mxu0 %v451
          %457 = vmatprep.subr.mxu0 0.0
          %458 = vmatpush1.msra.mxu0 0.0
          %459 = vmatprep.subr.mxu0 0.0
          %460 = vmatpush1.msra.mxu0 0.0
          %461 = vmatprep.subr.mxu0 0.0
          %462 = vmatpush1.msra.mxu0 0.0
          %463 = vmatprep.subr.mxu0 0.0
          %464 = vmatpush1.msra.mxu0 0.0
          %465 = vmatprep.subr.mxu0 0.0
          %466 = vmatpush1.msra.mxu0 0.0
          %467 = vmatprep.subr.mxu0 0.0
          %468 = vmatpush1.msra.mxu0 0.0
          %469 = vmatprep.subr.mxu0 0.0
          %470 = vmatpush1.msra.mxu0 0.0
          %471 = vmatprep.subr.mxu0 0.0
          %472 = vmatpush1.msra.mxu0 0.0
          %473 = vmatprep.subr.mxu0 0.0
          %474 = vmatpush1.msra.mxu0 0.0
          %475 = vmatprep.subr.mxu0 0.0
          %476 = vmatpush1.msra.mxu0 0.0
          %477 = vmatprep.subr.mxu0 0.0
          %478 = vmatpush1.msra.mxu0 0.0
          %479 = vmatprep.subr.mxu0 0.0
          %480 = vmatpush1.msra.mxu0 0.0
          %481 = vmatprep.subr.mxu0 0.0
          %482 = vmatpush1.msra.mxu0 0.0
          %483 = vmatprep.subr.mxu0 0.0
          %484 = vmatpush1.msra.mxu0 0.0
          %485 = vmatprep.subr.mxu0 0.0
          %486 = vmatpush1.msra.mxu0 0.0
          %487 = vmatprep.subr.mxu0 0.0
          %488 = vmatpush1.msra.mxu0 0.0
          %489 = vmatprep.subr.mxu0 0.0
          %490 = vmatpush1.msra.mxu0 0.0
          %491 = vmatprep.subr.mxu0 0.0
          %492 = vmatpush1.msra.mxu0 0.0
          %493 = vmatprep.subr.mxu0 0.0
          %494 = vmatpush1.msra.mxu0 0.0
          %495 = vmatprep.subr.mxu0 0.0
          %496 = vmatpush1.msra.mxu0 0.0
          %497 = vmatprep.subr.mxu0 0.0
          %498 = vmatpush1.msra.mxu0 0.0
          %499 = vmatprep.subr.mxu0 0.0
          %500 = vmatpush1.msra.mxu0 0.0
          %501 = vmatprep.subr.mxu0 0.0
          %502 = vmatpush1.msra.mxu0 0.0
          %503 = vmatprep.subr.mxu0 0.0
          %504 = vmatpush1.msra.mxu0 0.0
          %505 = vmatprep.subr.mxu0 0.0
          %506 = vmatpush1.msra.mxu0 0.0
          %507 = vmatprep.subr.mxu0 0.0
          %508 = vmatpush1.msra.mxu0 0.0
          %509 = vmatprep.subr.mxu0 0.0
          %510 = vmatpush1.msra.mxu0 0.0
          %511 = vmatprep.subr.mxu0 0.0
          %512 = vmatpush1.msra.mxu0 0.0
          %513 = vmatprep.subr.mxu0 0.0
          %514 = vmatpush1.msra.mxu0 0.0
          %515 = vmatprep.subr.mxu0 0.0
          %516 = vmatpush1.msra.mxu0 0.0
          %517 = vmatprep.subr.mxu0 0.0
          %518 = vmatpush1.msra.mxu0 0.0
          %519 = vmatprep.mubr.f32.mxu0 0.0
          %520 = vmatmul.mubr.f32.gmra.mrb[0].mxu0 %v355
          %v521 = vpop.f32.mrb[0].mxu0
          %v522 = vadd.f32 %v344, %v521
          %v523 = vpop.f32.mrb[0].mxu0
          %v524 = vadd.f32 %v348, %v523
          %525 = vmatprep.mubr.f32.mxu0 0.0
          %526 = vmatmul.mubr.f32.gmra.mrb[0].mxu0 %v358
          %v527 = vpop.f32.mrb[0].mxu0
          %v528 = vadd.f32 %v344, %v527
          %v529 = vpop.f32.mrb[0].mxu0
          %v530 = vadd.f32 %v348, %v529
          %531 = vmatprep.mubr.f32.mxu0 0.0
          %532 = vmatmul.mubr.f32.gmra.mrb[0].mxu0 %v361
          %v533 = vpop.f32.mrb[0].mxu0
          %v534 = vadd.f32 %v344, %v533
          %v535 = vpop.f32.mrb[0].mxu0
          %v536 = vadd.f32 %v348, %v535
          %537 = vmatprep.mubr.f32.mxu0 0.0
          %538 = vmatmul.mubr.f32.gmra.mrb[0].mxu0 %v364
          %v539 = vpop.f32.mrb[0].mxu0
          %v540 = vadd.f32 %v344, %v539
          %v541 = vpop.f32.mrb[0].mxu0
          %v542 = vadd.f32 %v348, %v541
          %543 = vmatprep.mubr.f32.mxu0 0.0
          %544 = vmatmul.mubr.f32.gmra.mrb[0].mxu0 %v367
          %v545 = vpop.f32.mrb[0].mxu0
          %v546 = vadd.f32 %v344, %v545
          %v547 = vpop.f32.mrb[0].mxu0
          %v548 = vadd.f32 %v348, %v547
          %549 = vmatprep.mubr.f32.mxu0 0.0
          %550 = vmatmul.mubr.f32.gmra.mrb[0].mxu0 %v370
          %v551 = vpop.f32.mrb[0].mxu0
          %v552 = vadd.f32 %v344, %v551
          %v553 = vpop.f32.mrb[0].mxu0
          %v554 = vadd.f32 %v348, %v553
          %555 = vmatprep.mubr.f32.mxu0 0.0
          %556 = vmatmul.mubr.f32.gmra.mrb[0].mxu0 %v373
          %v557 = vpop.f32.mrb[0].mxu0
          %v558 = vadd.f32 %v344, %v557
          %v559 = vpop.f32.mrb[0].mxu0
          %v560 = vadd.f32 %v348, %v559
          %561 = vmatprep.mubr.f32.mxu0 0.0
          %562 = vmatmul.mubr.f32.gmra.mrb[0].mxu0 %v376
          %v563 = vpop.f32.mrb[0].mxu0
          %v564 = vadd.f32 %v344, %v563
          %v565 = vpop.f32.mrb[0].mxu0
          %v566 = vadd.f32 %v348, %v565
          %567 = vmatprep.mubr.f32.mxu0 0.0
          %568 = vmatmul.mubr.f32.gmra.mrb[0].mxu0 %v379
          %v569 = vpop.f32.mrb[0].mxu0
          %v570 = vadd.f32 %v344, %v569
          %v571 = vpop.f32.mrb[0].mxu0
          %v572 = vadd.f32 %v348, %v571
          %573 = vmatprep.mubr.f32.mxu0 0.0
          %574 = vmatmul.mubr.f32.gmra.mrb[0].mxu0 %v382
          %v575 = vpop.f32.mrb[0].mxu0
          %v576 = vadd.f32 %v344, %v575
          %v577 = vpop.f32.mrb[0].mxu0
          %v578 = vadd.f32 %v348, %v577
          %579 = vmatprep.mubr.f32.mxu0 0.0
          %580 = vmatmul.mubr.f32.gmra.mrb[0].mxu0 %v385
          %v581 = vpop.f32.mrb[0].mxu0
          %v582 = vadd.f32 %v344, %v581
          %v583 = vpop.f32.mrb[0].mxu0
          %v584 = vadd.f32 %v348, %v583
          %585 = vmatprep.mubr.f32.mxu0 0.0
          %586 = vmatmul.mubr.f32.gmra.mrb[0].mxu0 %v388
          %v587 = vpop.f32.mrb[0].mxu0
          %v588 = vadd.f32 %v344, %v587
          %v589 = vpop.f32.mrb[0].mxu0
          %v590 = vadd.f32 %v348, %v589
          %591 = vmatprep.mubr.f32.mxu0 0.0
          %592 = vmatmul.mubr.f32.gmra.mrb[0].mxu0 %v391
          %v593 = vpop.f32.mrb[0].mxu0
          %v594 = vadd.f32 %v344, %v593
          %v595 = vpop.f32.mrb[0].mxu0
          %v596 = vadd.f32 %v348, %v595
          %597 = vmatprep.mubr.f32.mxu0 0.0
          %598 = vmatmul.mubr.f32.gmra.mrb[0].mxu0 %v394
          %v599 = vpop.f32.mrb[0].mxu0
          %v600 = vadd.f32 %v344, %v599
          %v601 = vpop.f32.mrb[0].mxu0
          %v602 = vadd.f32 %v348, %v601
          %603 = vmatprep.mubr.f32.mxu0 0.0
          %604 = vmatmul.mubr.f32.gmra.mrb[0].mxu0 %v397
          %v605 = vpop.f32.mrb[0].mxu0
          %v606 = vadd.f32 %v344, %v605
          %v607 = vpop.f32.mrb[0].mxu0
          %v608 = vadd.f32 %v348, %v607
          %609 = vmatprep.mubr.f32.mxu0 0.0
          %610 = vmatmul.mubr.f32.gmra.mrb[0].mxu0 %v400
          %v611 = vpop.f32.mrb[0].mxu0
          %v612 = vadd.f32 %v344, %v611
          %v613 = vpop.f32.mrb[0].mxu0
          %v614 = vadd.f32 %v348, %v613
          %615 = vmatprep.mubr.f32.mxu0 0.0
          %616 = vmatmul.mubr.f32.gmra.mrb[0].mxu0 %v403
          %v617 = vpop.f32.mrb[0].mxu0
          %v618 = vadd.f32 %v344, %v617
          %v619 = vpop.f32.mrb[0].mxu0
          %v620 = vadd.f32 %v348, %v619
          %621 = vmatprep.mubr.f32.mxu0 0.0
          %622 = vmatmul.mubr.f32.gmra.mrb[0].mxu0 %v406
          %v623 = vpop.f32.mrb[0].mxu0
          %v624 = vadd.f32 %v344, %v623
          %v625 = vpop.f32.mrb[0].mxu0
          %v626 = vadd.f32 %v348, %v625
          %627 = vmatprep.mubr.f32.mxu0 0.0
          %628 = vmatmul.mubr.f32.gmra.mrb[0].mxu0 %v409
          %v629 = vpop.f32.mrb[0].mxu0
          %v630 = vadd.f32 %v344, %v629
          %v631 = vpop.f32.mrb[0].mxu0
          %v632 = vadd.f32 %v348, %v631
          %633 = vmatprep.mubr.f32.mxu0 0.0
          %634 = vmatmul.mubr.f32.gmra.mrb[0].mxu0 %v412
          %v635 = vpop.f32.mrb[0].mxu0
          %v636 = vadd.f32 %v344, %v635
          %v637 = vpop.f32.mrb[0].mxu0
          %v638 = vadd.f32 %v348, %v637
          %639 = vmatprep.mubr.f32.mxu0 0.0
          %640 = vmatmul.mubr.f32.gmra.mrb[0].mxu0 %v415
          %v641 = vpop.f32.mrb[0].mxu0
          %v642 = vadd.f32 %v344, %v641
          %v643 = vpop.f32.mrb[0].mxu0
          %v644 = vadd.f32 %v348, %v643
          %645 = vmatprep.mubr.f32.mxu0 0.0
          %646 = vmatmul.mubr.f32.gmra.mrb[0].mxu0 %v418
          %v647 = vpop.f32.mrb[0].mxu0
          %v648 = vadd.f32 %v344, %v647
          %v649 = vpop.f32.mrb[0].mxu0
          %v650 = vadd.f32 %v348, %v649
          %651 = vmatprep.mubr.f32.mxu0 0.0
          %652 = vmatmul.mubr.f32.gmra.mrb[0].mxu0 %v421
          %v653 = vpop.f32.mrb[0].mxu0
          %v654 = vadd.f32 %v344, %v653
          %v655 = vpop.f32.mrb[0].mxu0
          %v656 = vadd.f32 %v348, %v655
          %657 = vmatprep.mubr.f32.mxu0 0.0
          %658 = vmatmul.mubr.f32.gmra.mrb[0].mxu0 %v424
          %v659 = vpop.f32.mrb[0].mxu0
          %v660 = vadd.f32 %v344, %v659
          %v661 = vpop.f32.mrb[0].mxu0
          %v662 = vadd.f32 %v348, %v661
          %663 = vmatprep.mubr.f32.mxu0 0.0
          %664 = vmatmul.mubr.f32.gmra.mrb[0].mxu0 %v427
          %v665 = vpop.f32.mrb[0].mxu0
          %v666 = vadd.f32 %v344, %v665
          %v667 = vpop.f32.mrb[0].mxu0
          %v668 = vadd.f32 %v348, %v667
          %669 = vmatprep.mubr.f32.mxu0 0.0
          %670 = vmatmul.mubr.f32.gmra.mrb[0].mxu0 %v430
          %v671 = vpop.f32.mrb[0].mxu0
          %v672 = vadd.f32 %v344, %v671
          %v673 = vpop.f32.mrb[0].mxu0
          %v674 = vadd.f32 %v348, %v673
          %675 = vmatprep.mubr.f32.mxu0 0.0
          %676 = vmatmul.mubr.f32.gmra.mrb[0].mxu0 %v433
          %v677 = vpop.f32.mrb[0].mxu0
          %v678 = vadd.f32 %v344, %v677
          %v679 = vpop.f32.mrb[0].mxu0
          %v680 = vadd.f32 %v348, %v679
          %681 = vmatprep.mubr.f32.mxu0 0.0
          %682 = vmatmul.mubr.f32.gmra.mrb[0].mxu0 %v436
          %v683 = vpop.f32.mrb[0].mxu0
          %v684 = vadd.f32 %v344, %v683
          %v685 = vpop.f32.mrb[0].mxu0
          %v686 = vadd.f32 %v348, %v685
          %687 = vmatprep.mubr.f32.mxu0 0.0
          %688 = vmatmul.mubr.f32.gmra.mrb[0].mxu0 %v439
          %v689 = vpop.f32.mrb[0].mxu0
          %v690 = vadd.f32 %v344, %v689
          %v691 = vpop.f32.mrb[0].mxu0
          %v692 = vadd.f32 %v348, %v691
          %693 = vmatprep.mubr.f32.mxu0 0.0
          %694 = vmatmul.mubr.f32.gmra.mrb[0].mxu0 %v442
          %v695 = vpop.f32.mrb[0].mxu0
          %v696 = vadd.f32 %v344, %v695
          %v697 = vpop.f32.mrb[0].mxu0
          %v698 = vadd.f32 %v348, %v697
          %699 = vmatprep.mubr.f32.mxu0 0.0
          %700 = vmatmul.mubr.f32.gmra.mrb[0].mxu0 %v445
          %v701 = vpop.f32.mrb[0].mxu0
          %v702 = vadd.f32 %v344, %v701
          %v703 = vpop.f32.mrb[0].mxu0
          %v704 = vadd.f32 %v348, %v703
          %705 = vmatprep.mubr.f32.mxu0 0.0
          %706 = vmatmul.mubr.f32.gmra.mrb[0].mxu0 %v448
          %v707 = vpop.f32.mrb[0].mxu0
          %v708 = vadd.f32 %v344, %v707
          %v709 = vpop.f32.mrb[0].mxu0
          %v710 = vadd.f32 %v348, %v709
          %711 = vdwg.mxu0
          %v712 = vpack.c.bf16 %v528, %v522
          %v713 = vpack.c.bf16 %v540, %v534
          %v714 = vpack.c.bf16 %v552, %v546
          %v715 = vpack.c.bf16 %v564, %v558
          %v716 = vpack.c.bf16 %v576, %v570
          %v717 = vpack.c.bf16 %v588, %v582
          %v718 = vpack.c.bf16 %v600, %v594
          %v719 = vpack.c.bf16 %v612, %v606
          %v720 = vpack.c.bf16 %v624, %v618
          %v721 = vpack.c.bf16 %v636, %v630
          %v722 = vpack.c.bf16 %v648, %v642
          %v723 = vpack.c.bf16 %v660, %v654
          %v724 = vpack.c.bf16 %v672, %v666
          %v725 = vpack.c.bf16 %v684, %v678
          %v726 = vpack.c.bf16 %v696, %v690
          %v727 = vpack.c.bf16 %v708, %v702
          %728 = vst [vmem:[#allocation3] sm:$0xff] %v712
          %729 = vst [vmem:[#allocation3 + $0x8] sm:$0xff] %v713
          %730 = vst [vmem:[#allocation3 + $0x10] sm:$0xff] %v714
          %731 = vst [vmem:[#allocation3 + $0x18] sm:$0xff] %v715
          %732 = vst [vmem:[#allocation3 + $0x20] sm:$0xff] %v716
          %733 = vst [vmem:[#allocation3 + $0x28] sm:$0xff] %v717
          %734 = vst [vmem:[#allocation3 + $0x30] sm:$0xff] %v718
          %735 = vst [vmem:[#allocation3 + $0x38] sm:$0xff] %v719
          %736 = vst [vmem:[#allocation3 + $0x40] sm:$0xff] %v720
          %737 = vst [vmem:[#allocation3 + $0x48] sm:$0xff] %v721
          %738 = vst [vmem:[#allocation3 + $0x50] sm:$0xff] %v722
          %739 = vst [vmem:[#allocation3 + $0x58] sm:$0xff] %v723
          %740 = vst [vmem:[#allocation3 + $0x60] sm:$0xff] %v724
          %741 = vst [vmem:[#allocation3 + $0x68] sm:$0xff] %v725
          %742 = vst [vmem:[#allocation3 + $0x70] sm:$0xff] %v726
          %743 = vst [vmem:[#allocation3 + $0x78] sm:$0xff] %v727
          %v744 = vpack.c.bf16 %v530, %v524
          %v745 = vpack.c.bf16 %v542, %v536
          %v746 = vpack.c.bf16 %v554, %v548
          %v747 = vpack.c.bf16 %v566, %v560
          %v748 = vpack.c.bf16 %v578, %v572
          %v749 = vpack.c.bf16 %v590, %v584
          %v750 = vpack.c.bf16 %v602, %v596
          %v751 = vpack.c.bf16 %v614, %v608
          %v752 = vpack.c.bf16 %v626, %v620
          %v753 = vpack.c.bf16 %v638, %v632
          %v754 = vpack.c.bf16 %v650, %v644
          %v755 = vpack.c.bf16 %v662, %v656
          %v756 = vpack.c.bf16 %v674, %v668
          %v757 = vpack.c.bf16 %v686, %v680
          %v758 = vpack.c.bf16 %v698, %v692
          %v759 = vpack.c.bf16 %v710, %v704
          %760 = vst.msk [vmem:[#allocation2] sm:$0xff] %vm353, %v744
          %761 = vst.msk [vmem:[#allocation2 + $0x8] sm:$0xff] %vm353, %v745
          %762 = vst.msk [vmem:[#allocation2 + $0x10] sm:$0xff] %vm353, %v746
          %763 = vst.msk [vmem:[#allocation2 + $0x18] sm:$0xff] %vm353, %v747
          %764 = vst.msk [vmem:[#allocation2 + $0x20] sm:$0xff] %vm353, %v748
          %765 = vst.msk [vmem:[#allocation2 + $0x28] sm:$0xff] %vm353, %v749
          %766 = vst.msk [vmem:[#allocation2 + $0x30] sm:$0xff] %vm353, %v750
          %767 = vst.msk [vmem:[#allocation2 + $0x38] sm:$0xff] %vm353, %v751
          %768 = vst.msk [vmem:[#allocation2 + $0x40] sm:$0xff] %vm353, %v752
          %769 = vst.msk [vmem:[#allocation2 + $0x48] sm:$0xff] %vm353, %v753
          %770 = vst.msk [vmem:[#allocation2 + $0x50] sm:$0xff] %vm353, %v754
          %771 = vst.msk [vmem:[#allocation2 + $0x58] sm:$0xff] %vm353, %v755
          %772 = vst.msk [vmem:[#allocation2 + $0x60] sm:$0xff] %vm353, %v756
          %773 = vst.msk [vmem:[#allocation2 + $0x68] sm:$0xff] %vm353, %v757
          %774 = vst.msk [vmem:[#allocation2 + $0x70] sm:$0xff] %vm353, %v758
          %775 = vst.msk [vmem:[#allocation2 + $0x78] sm:$0xff] %vm353, %v759
        $region48: #{tpu_custom_call.1} parent=43 // pred_fallthru
          _
        %v776 = vld [vmem:[%s293] sm:$0xff]
        %v777 = vld [vmem:[%s293 + $0x8] sm:$0xff]
        %v778 = vld [vmem:[%s293 + $0x10] sm:$0xff]
        %v779 = vld [vmem:[%s293 + $0x18] sm:$0xff]
        %v780 = vld [vmem:[%s293 + $0x20] sm:$0xff]
        %v781 = vld [vmem:[%s293 + $0x28] sm:$0xff]
        %v782 = vld [vmem:[%s293 + $0x30] sm:$0xff]
        %v783 = vld [vmem:[%s293 + $0x38] sm:$0xff]
        %v784 = vld [vmem:[%s293 + $0x40] sm:$0xff]
        %v785 = vld [vmem:[%s293 + $0x48] sm:$0xff]
        %v786 = vld [vmem:[%s293 + $0x50] sm:$0xff]
        %v787 = vld [vmem:[%s293 + $0x58] sm:$0xff]
        %v788 = vld [vmem:[%s293 + $0x60] sm:$0xff]
        %v789 = vld [vmem:[%s293 + $0x68] sm:$0xff]
        %v790 = vld [vmem:[%s293 + $0x70] sm:$0xff]
        %v791 = vld [vmem:[%s293 + $0x78] sm:$0xff]
        %v792 = vld [vmem:[%s2] sm:$0xf]
        %v793 = vld [vmem:[%s3] sm:$0x1]
        %v795 = vlaneseq
        %v796 = vshrl.u32 %v795, 7
        %v797 = vsub.s32 0, %v796
        %v798 = vrot.slane %v793, %v797
        %vm800 = vcmask 31744
        %v802 = vsel %vm800, %v776, 0
        %v805 = vsel %vm800, %v777, 0
        %v808 = vsel %vm800, %v778, 0
        %v811 = vsel %vm800, %v779, 0
        %v814 = vsel %vm800, %v780, 0
        %v817 = vsel %vm800, %v781, 0
        %v820 = vsel %vm800, %v782, 0
        %v823 = vsel %vm800, %v783, 0
        %v826 = vsel %vm800, %v784, 0
        %v829 = vsel %vm800, %v785, 0
        %v832 = vsel %vm800, %v786, 0
        %v835 = vsel %vm800, %v787, 0
        %v838 = vsel %vm800, %v788, 0
        %v841 = vsel %vm800, %v789, 0
        %v844 = vsel %vm800, %v790, 0
        %v847 = vsel %vm800, %v791, 0
        %vm849 = vcmask 1043456
        %v851 = vsel %vm849, %v792, 0
        %853 = vmatprep.subr.mxu0 0.0
        %854 = vmatpush1.msra.mxu0 %v851
        %855 = vmatprep.subr.mxu0 0.0
        %856 = vmatpush1.msra.mxu0 0.0
        %857 = vmatprep.subr.mxu0 0.0
        %858 = vmatpush1.msra.mxu0 0.0
        %859 = vmatprep.subr.mxu0 0.0
        %860 = vmatpush1.msra.mxu0 0.0
        %861 = vmatprep.subr.mxu0 0.0
        %862 = vmatpush1.msra.mxu0 0.0
        %863 = vmatprep.subr.mxu0 0.0
        %864 = vmatpush1.msra.mxu0 0.0
        %865 = vmatprep.subr.mxu0 0.0
        %866 = vmatpush1.msra.mxu0 0.0
        %867 = vmatprep.subr.mxu0 0.0
        %868 = vmatpush1.msra.mxu0 0.0
        %869 = vmatprep.subr.mxu0 0.0
        %870 = vmatpush1.msra.mxu0 0.0
        %871 = vmatprep.subr.mxu0 0.0
        %872 = vmatpush1.msra.mxu0 0.0
        %873 = vmatprep.subr.mxu0 0.0
        %874 = vmatpush1.msra.mxu0 0.0
        %875 = vmatprep.subr.mxu0 0.0
        %876 = vmatpush1.msra.mxu0 0.0
        %877 = vmatprep.subr.mxu0 0.0
        %878 = vmatpush1.msra.mxu0 0.0
        %879 = vmatprep.subr.mxu0 0.0
        %880 = vmatpush1.msra.mxu0 0.0
        %881 = vmatprep.subr.mxu0 0.0
        %882 = vmatpush1.msra.mxu0 0.0
        %883 = vmatprep.subr.mxu0 0.0
        %884 = vmatpush1.msra.mxu0 0.0
        %885 = vmatprep.subr.mxu0 0.0
        %886 = vmatpush1.msra.mxu0 0.0
        %887 = vmatprep.subr.mxu0 0.0
        %888 = vmatpush1.msra.mxu0 0.0
        %889 = vmatprep.subr.mxu0 0.0
        %890 = vmatpush1.msra.mxu0 0.0
        %891 = vmatprep.subr.mxu0 0.0
        %892 = vmatpush1.msra.mxu0 0.0
        %893 = vmatprep.subr.mxu0 0.0
        %894 = vmatpush1.msra.mxu0 0.0
        %895 = vmatprep.subr.mxu0 0.0
        %896 = vmatpush1.msra.mxu0 0.0
        %897 = vmatprep.subr.mxu0 0.0
        %898 = vmatpush1.msra.mxu0 0.0
        %899 = vmatprep.subr.mxu0 0.0
        %900 = vmatpush1.msra.mxu0 0.0
        %901 = vmatprep.subr.mxu0 0.0
        %902 = vmatpush1.msra.mxu0 0.0
        %903 = vmatprep.subr.mxu0 0.0
        %904 = vmatpush1.msra.mxu0 0.0
        %905 = vmatprep.subr.mxu0 0.0
        %906 = vmatpush1.msra.mxu0 0.0
        %907 = vmatprep.subr.mxu0 0.0
        %908 = vmatpush1.msra.mxu0 0.0
        %909 = vmatprep.subr.mxu0 0.0
        %910 = vmatpush1.msra.mxu0 0.0
        %911 = vmatprep.subr.mxu0 0.0
        %912 = vmatpush1.msra.mxu0 0.0
        %913 = vmatprep.subr.mxu0 0.0
        %914 = vmatpush1.msra.mxu0 0.0
        %915 = vmatprep.subr.mxu0 0.0
        %916 = vmatpush1.msra.mxu0 0.0
        %917 = vmatprep.mubr.f32.mxu0 0.0
        %918 = vmatmul.mubr.f32.gmra.mrb[0].mxu0 %v802
        %v919 = vpop.f32.mrb[0].mxu0
        %v920 = vadd.f32 %v798, %v919
        %v921 = vpop.f32.mrb[0].mxu0
        %922 = vmatprep.mubr.f32.mxu0 0.0
        %923 = vmatmul.mubr.f32.gmra.mrb[0].mxu0 %v805
        %v924 = vpop.f32.mrb[0].mxu0
        %v925 = vadd.f32 %v798, %v924
        %v926 = vpop.f32.mrb[0].mxu0
        %927 = vmatprep.mubr.f32.mxu0 0.0
        %928 = vmatmul.mubr.f32.gmra.mrb[0].mxu0 %v808
        %v929 = vpop.f32.mrb[0].mxu0
        %v930 = vadd.f32 %v798, %v929
        %v931 = vpop.f32.mrb[0].mxu0
        %932 = vmatprep.mubr.f32.mxu0 0.0
        %933 = vmatmul.mubr.f32.gmra.mrb[0].mxu0 %v811
        %v934 = vpop.f32.mrb[0].mxu0
        %v935 = vadd.f32 %v798, %v934
        %v936 = vpop.f32.mrb[0].mxu0
        %937 = vmatprep.mubr.f32.mxu0 0.0
        %938 = vmatmul.mubr.f32.gmra.mrb[0].mxu0 %v814
        %v939 = vpop.f32.mrb[0].mxu0
        %v940 = vadd.f32 %v798, %v939
        %v941 = vpop.f32.mrb[0].mxu0
        %942 = vmatprep.mubr.f32.mxu0 0.0
        %943 = vmatmul.mubr.f32.gmra.mrb[0].mxu0 %v817
        %v944 = vpop.f32.mrb[0].mxu0
        %v945 = vadd.f32 %v798, %v944
        %v946 = vpop.f32.mrb[0].mxu0
        %947 = vmatprep.mubr.f32.mxu0 0.0
        %948 = vmatmul.mubr.f32.gmra.mrb[0].mxu0 %v820
        %v949 = vpop.f32.mrb[0].mxu0
        %v950 = vadd.f32 %v798, %v949
        %v951 = vpop.f32.mrb[0].mxu0
        %952 = vmatprep.mubr.f32.mxu0 0.0
        %953 = vmatmul.mubr.f32.gmra.mrb[0].mxu0 %v823
        %v954 = vpop.f32.mrb[0].mxu0
        %v955 = vadd.f32 %v798, %v954
        %v956 = vpop.f32.mrb[0].mxu0
        %957 = vmatprep.mubr.f32.mxu0 0.0
        %958 = vmatmul.mubr.f32.gmra.mrb[0].mxu0 %v826
        %v959 = vpop.f32.mrb[0].mxu0
        %v960 = vadd.f32 %v798, %v959
        %v961 = vpop.f32.mrb[0].mxu0
        %962 = vmatprep.mubr.f32.mxu0 0.0
        %963 = vmatmul.mubr.f32.gmra.mrb[0].mxu0 %v829
        %v964 = vpop.f32.mrb[0].mxu0
        %v965 = vadd.f32 %v798, %v964
        %v966 = vpop.f32.mrb[0].mxu0
        %967 = vmatprep.mubr.f32.mxu0 0.0
        %968 = vmatmul.mubr.f32.gmra.mrb[0].mxu0 %v832
        %v969 = vpop.f32.mrb[0].mxu0
        %v970 = vadd.f32 %v798, %v969
        %v971 = vpop.f32.mrb[0].mxu0
        %972 = vmatprep.mubr.f32.mxu0 0.0
        %973 = vmatmul.mubr.f32.gmra.mrb[0].mxu0 %v835
        %v974 = vpop.f32.mrb[0].mxu0
        %v975 = vadd.f32 %v798, %v974
        %v976 = vpop.f32.mrb[0].mxu0
        %977 = vmatprep.mubr.f32.mxu0 0.0
        %978 = vmatmul.mubr.f32.gmra.mrb[0].mxu0 %v838
        %v979 = vpop.f32.mrb[0].mxu0
        %v980 = vadd.f32 %v798, %v979
        %v981 = vpop.f32.mrb[0].mxu0
        %982 = vmatprep.mubr.f32.mxu0 0.0
        %983 = vmatmul.mubr.f32.gmra.mrb[0].mxu0 %v841
        %v984 = vpop.f32.mrb[0].mxu0
        %v985 = vadd.f32 %v798, %v984
        %v986 = vpop.f32.mrb[0].mxu0
        %987 = vmatprep.mubr.f32.mxu0 0.0
        %988 = vmatmul.mubr.f32.gmra.mrb[0].mxu0 %v844
        %v989 = vpop.f32.mrb[0].mxu0
        %v990 = vadd.f32 %v798, %v989
        %v991 = vpop.f32.mrb[0].mxu0
        %992 = vmatprep.mubr.f32.mxu0 0.0
        %993 = vmatmul.mubr.f32.gmra.mrb[0].mxu0 %v847
        %v994 = vpop.f32.mrb[0].mxu0
        %v995 = vadd.f32 %v798, %v994
        %v996 = vpop.f32.mrb[0].mxu0
        %997 = vdwg.mxu0
        %v998 = vpack.c.bf16 %v925, %v920
        %v999 = vpack.c.bf16 %v935, %v930
        %v1000 = vpack.c.bf16 %v945, %v940
        %v1001 = vpack.c.bf16 %v955, %v950
        %v1002 = vpack.c.bf16 %v965, %v960
        %v1003 = vpack.c.bf16 %v975, %v970
        %v1004 = vpack.c.bf16 %v985, %v980
        %v1005 = vpack.c.bf16 %v995, %v990
        %v1006 = vld [vmem:[#allocation2] sm:$0xff]
        %v1007 = vld [vmem:[#allocation2 + $0x8] sm:$0xff]
        %v1008 = vld [vmem:[#allocation2 + $0x10] sm:$0xff]
        %v1009 = vld [vmem:[#allocation2 + $0x18] sm:$0xff]
        %v1010 = vld [vmem:[#allocation2 + $0x20] sm:$0xff]
        %v1011 = vld [vmem:[#allocation2 + $0x28] sm:$0xff]
        %v1012 = vld [vmem:[#allocation2 + $0x30] sm:$0xff]
        %v1013 = vld [vmem:[#allocation2 + $0x38] sm:$0xff]
        %v1014 = vld [vmem:[#allocation2 + $0x40] sm:$0xff]
        %v1015 = vld [vmem:[#allocation2 + $0x48] sm:$0xff]
        %v1016 = vld [vmem:[#allocation2 + $0x50] sm:$0xff]
        %v1017 = vld [vmem:[#allocation2 + $0x58] sm:$0xff]
        %v1018 = vld [vmem:[#allocation2 + $0x60] sm:$0xff]
        %v1019 = vld [vmem:[#allocation2 + $0x68] sm:$0xff]
        %v1020 = vld [vmem:[#allocation2 + $0x70] sm:$0xff]
        %v1021 = vld [vmem:[#allocation2 + $0x78] sm:$0xff]
        %v1023 = vsel %vm800, %v998, 0
        %v1026 = vsel %vm800, %v999, 0
        %v1029 = vsel %vm800, %v1000, 0
        %v1032 = vsel %vm800, %v1001, 0
        %v1035 = vsel %vm800, %v1002, 0
        %v1038 = vsel %vm800, %v1003, 0
        %v1041 = vsel %vm800, %v1004, 0
        %v1044 = vsel %vm800, %v1005, 0
        %v1047 = vsel %vm800, %v1006, 0
        %v1050 = vsel %vm800, %v1007, 0
        %v1053 = vsel %vm800, %v1008, 0
        %v1056 = vsel %vm800, %v1009, 0
        %v1059 = vsel %vm800, %v1010, 0
        %v1062 = vsel %vm800, %v1011, 0
        %v1065 = vsel %vm800, %v1012, 0
        %v1068 = vsel %vm800, %v1013, 0
        %v1071 = vsel %vm800, %v1014, 0
        %v1074 = vsel %vm800, %v1015, 0
        %v1077 = vsel %vm800, %v1016, 0
        %v1080 = vsel %vm800, %v1017, 0
        %v1083 = vsel %vm800, %v1018, 0
        %v1086 = vsel %vm800, %v1019, 0
        %v1089 = vsel %vm800, %v1020, 0
        %v1092 = vsel %vm800, %v1021, 0
        %1094 = vmatprep.subr.bf16.mxu0 0
        %1095 = vmatpush1.bf16.xpose.msra.mxu0 %v1047
        %1096 = vmatprep.subr.bf16.mxu0 0
        %1097 = vmatpush1.bf16.xpose.msra.mxu0 %v1050
        %1098 = vmatprep.subr.bf16.mxu0 0
        %1099 = vmatpush1.bf16.xpose.msra.mxu0 %v1053
        %1100 = vmatprep.subr.bf16.mxu0 0
        %1101 = vmatpush1.bf16.xpose.msra.mxu0 %v1056
        %1102 = vmatprep.subr.bf16.mxu0 0
        %1103 = vmatpush1.bf16.xpose.msra.mxu0 %v1059
        %1104 = vmatprep.subr.bf16.mxu0 0
        %1105 = vmatpush1.bf16.xpose.msra.mxu0 %v1062
        %1106 = vmatprep.subr.bf16.mxu0 0
        %1107 = vmatpush1.bf16.xpose.msra.mxu0 %v1065
        %1108 = vmatprep.subr.bf16.mxu0 0
        %1109 = vmatpush1.bf16.xpose.msra.mxu0 %v1068
        %1110 = vmatprep.subr.bf16.mxu0 0
        %1111 = vmatpush1.bf16.xpose.msra.mxu0 %v1071
        %1112 = vmatprep.subr.bf16.mxu0 0
        %1113 = vmatpush1.bf16.xpose.msra.mxu0 %v1074
        %1114 = vmatprep.subr.bf16.mxu0 0
        %1115 = vmatpush1.bf16.xpose.msra.mxu0 %v1077
        %1116 = vmatprep.subr.bf16.mxu0 0
        %1117 = vmatpush1.bf16.xpose.msra.mxu0 %v1080
        %1118 = vmatprep.subr.bf16.mxu0 0
        %1119 = vmatpush1.bf16.xpose.msra.mxu0 %v1083
        %1120 = vmatprep.subr.bf16.mxu0 0
        %1121 = vmatpush1.bf16.xpose.msra.mxu0 %v1086
        %1122 = vmatprep.subr.bf16.mxu0 0
        %1123 = vmatpush1.bf16.xpose.msra.mxu0 %v1089
        %1124 = vmatprep.subr.bf16.mxu0 0
        %1125 = vmatpush1.bf16.xpose.msra.mxu0 %v1092
        %1126 = vmatprep.mubr.bf16.mxu0 0
        %1127 = vmatmul.mubr.bf16.gmra.mrb[0].mxu0 %v1023
        %v1128 = vpop.f32.mrb[0].mxu0
        %v1129 = vadd.f32 0.0, %v1128
        %v1130 = vpop.f32.mrb[0].mxu0
        %v1131 = vadd.f32 0.0, %v1130
        %v1132 = vpop.f32.mrb[0].mxu0
        %v1133 = vadd.f32 0.0, %v1132
        %v1134 = vpop.f32.mrb[0].mxu0
        %v1135 = vadd.f32 0.0, %v1134
        %1136 = vmatprep.mubr.bf16.mxu0 0
        %1137 = vmatmul.mubr.bf16.gmra.mrb[0].mxu0 %v1026
        %v1138 = vpop.f32.mrb[0].mxu0
        %v1139 = vadd.f32 0.0, %v1138
        %v1140 = vpop.f32.mrb[0].mxu0
        %v1141 = vadd.f32 0.0, %v1140
        %v1142 = vpop.f32.mrb[0].mxu0
        %v1143 = vadd.f32 0.0, %v1142
        %v1144 = vpop.f32.mrb[0].mxu0
        %v1145 = vadd.f32 0.0, %v1144
        %1146 = vmatprep.mubr.bf16.mxu0 0
        %1147 = vmatmul.mubr.bf16.gmra.mrb[0].mxu0 %v1029
        %v1148 = vpop.f32.mrb[0].mxu0
        %v1149 = vadd.f32 0.0, %v1148
        %v1150 = vpop.f32.mrb[0].mxu0
        %v1151 = vadd.f32 0.0, %v1150
        %v1152 = vpop.f32.mrb[0].mxu0
        %v1153 = vadd.f32 0.0, %v1152
        %v1154 = vpop.f32.mrb[0].mxu0
        %v1155 = vadd.f32 0.0, %v1154
        %1156 = vmatprep.mubr.bf16.mxu0 0
        %1157 = vmatmul.mubr.bf16.gmra.mrb[0].mxu0 %v1032
        %v1158 = vpop.f32.mrb[0].mxu0
        %v1159 = vadd.f32 0.0, %v1158
        %v1160 = vpop.f32.mrb[0].mxu0
        %v1161 = vadd.f32 0.0, %v1160
        %v1162 = vpop.f32.mrb[0].mxu0
        %v1163 = vadd.f32 0.0, %v1162
        %v1164 = vpop.f32.mrb[0].mxu0
        %v1165 = vadd.f32 0.0, %v1164
        %1166 = vmatprep.mubr.bf16.mxu0 0
        %1167 = vmatmul.mubr.bf16.gmra.mrb[0].mxu0 %v1035
        %v1168 = vpop.f32.mrb[0].mxu0
        %v1169 = vadd.f32 0.0, %v1168
        %v1170 = vpop.f32.mrb[0].mxu0
        %v1171 = vadd.f32 0.0, %v1170
        %v1172 = vpop.f32.mrb[0].mxu0
        %v1173 = vadd.f32 0.0, %v1172
        %v1174 = vpop.f32.mrb[0].mxu0
        %v1175 = vadd.f32 0.0, %v1174
        %1176 = vmatprep.mubr.bf16.mxu0 0
        %1177 = vmatmul.mubr.bf16.gmra.mrb[0].mxu0 %v1038
        %v1178 = vpop.f32.mrb[0].mxu0
        %v1179 = vadd.f32 0.0, %v1178
        %v1180 = vpop.f32.mrb[0].mxu0
        %v1181 = vadd.f32 0.0, %v1180
        %v1182 = vpop.f32.mrb[0].mxu0
        %v1183 = vadd.f32 0.0, %v1182
        %v1184 = vpop.f32.mrb[0].mxu0
        %v1185 = vadd.f32 0.0, %v1184
        %1186 = vmatprep.mubr.bf16.mxu0 0
        %1187 = vmatmul.mubr.bf16.gmra.mrb[0].mxu0 %v1041
        %v1188 = vpop.f32.mrb[0].mxu0
        %v1189 = vadd.f32 0.0, %v1188
        %v1190 = vpop.f32.mrb[0].mxu0
        %v1191 = vadd.f32 0.0, %v1190
        %v1192 = vpop.f32.mrb[0].mxu0
        %v1193 = vadd.f32 0.0, %v1192
        %v1194 = vpop.f32.mrb[0].mxu0
        %v1195 = vadd.f32 0.0, %v1194
        %1196 = vmatprep.mubr.bf16.mxu0 0
        %1197 = vmatmul.mubr.bf16.gmra.mrb[0].mxu0 %v1044
        %v1198 = vpop.f32.mrb[0].mxu0
        %v1199 = vadd.f32 0.0, %v1198
        %v1200 = vpop.f32.mrb[0].mxu0
        %v1201 = vadd.f32 0.0, %v1200
        %v1202 = vpop.f32.mrb[0].mxu0
        %v1203 = vadd.f32 0.0, %v1202
        %v1204 = vpop.f32.mrb[0].mxu0
        %v1205 = vadd.f32 0.0, %v1204
        %1206 = vdwg.mxu0
        %v1207 = vmax.f32 %v1129, %v1131
        %1208 = vmax.xlane.f32.xlu0 %v1207
        %v1209 = vpop.xlane.xlu0 %1208
        %v1210 = vmax.f32 %v1133, %v1135
        %1211 = vmax.xlane.f32.xlu0 %v1210
        %v1212 = vpop.xlane.xlu0 %1211
        %v1213 = vmax.f32 %v1139, %v1141
        %1214 = vmax.xlane.f32.xlu0 %v1213
        %v1215 = vpop.xlane.xlu0 %1214
        %v1216 = vmax.f32 %v1143, %v1145
        %1217 = vmax.xlane.f32.xlu0 %v1216
        %v1218 = vpop.xlane.xlu0 %1217
        %v1219 = vmax.f32 %v1149, %v1151
        %1220 = vmax.xlane.f32.xlu0 %v1219
        %v1221 = vpop.xlane.xlu0 %1220
        %v1222 = vmax.f32 %v1153, %v1155
        %1223 = vmax.xlane.f32.xlu0 %v1222
        %v1224 = vpop.xlane.xlu0 %1223
        %v1225 = vmax.f32 %v1159, %v1161
        %1226 = vmax.xlane.f32.xlu0 %v1225
        %v1227 = vpop.xlane.xlu0 %1226
        %v1228 = vmax.f32 %v1163, %v1165
        %1229 = vmax.xlane.f32.xlu0 %v1228
        %v1230 = vpop.xlane.xlu0 %1229
        %v1231 = vmax.f32 %v1169, %v1171
        %1232 = vmax.xlane.f32.xlu0 %v1231
        %v1233 = vpop.xlane.xlu0 %1232
        %v1234 = vmax.f32 %v1173, %v1175
        %1235 = vmax.xlane.f32.xlu0 %v1234
        %v1236 = vpop.xlane.xlu0 %1235
        %v1237 = vmax.f32 %v1179, %v1181
        %1238 = vmax.xlane.f32.xlu0 %v1237
        %v1239 = vpop.xlane.xlu0 %1238
        %v1240 = vmax.f32 %v1183, %v1185
        %1241 = vmax.xlane.f32.xlu0 %v1240
        %v1242 = vpop.xlane.xlu0 %1241
        %v1243 = vmax.f32 %v1189, %v1191
        %1244 = vmax.xlane.f32.xlu0 %v1243
        %v1245 = vpop.xlane.xlu0 %1244
        %v1246 = vmax.f32 %v1193, %v1195
        %1247 = vmax.xlane.f32.xlu0 %v1246
        %v1248 = vpop.xlane.xlu0 %1247
        %v1249 = vmax.f32 %v1199, %v1201
        %1250 = vmax.xlane.f32.xlu0 %v1249
        %v1251 = vpop.xlane.xlu0 %1250
        %v1252 = vmax.f32 %v1203, %v1205
        %1253 = vmax.xlane.f32.xlu0 %v1252
        %v1254 = vpop.xlane.xlu0 %1253
        %v1255 = vsub.f32 %v1129, %v1209
        %v1256 = vsub.f32 %v1131, %v1209
        %v1257 = vsub.f32 %v1133, %v1212
        %v1258 = vsub.f32 %v1135, %v1212
        %v1259 = vsub.f32 %v1139, %v1215
        %v1260 = vsub.f32 %v1141, %v1215
        %v1261 = vsub.f32 %v1143, %v1218
        %v1262 = vsub.f32 %v1145, %v1218
        %v1263 = vsub.f32 %v1149, %v1221
        %v1264 = vsub.f32 %v1151, %v1221
        %v1265 = vsub.f32 %v1153, %v1224
        %v1266 = vsub.f32 %v1155, %v1224
        %v1267 = vsub.f32 %v1159, %v1227
        %v1268 = vsub.f32 %v1161, %v1227
        %v1269 = vsub.f32 %v1163, %v1230
        %v1270 = vsub.f32 %v1165, %v1230
        %v1271 = vsub.f32 %v1169, %v1233
        %v1272 = vsub.f32 %v1171, %v1233
        %v1273 = vsub.f32 %v1173, %v1236
        %v1274 = vsub.f32 %v1175, %v1236
        %v1275 = vsub.f32 %v1179, %v1239
        %v1276 = vsub.f32 %v1181, %v1239
        %v1277 = vsub.f32 %v1183, %v1242
        %v1278 = vsub.f32 %v1185, %v1242
        %v1279 = vsub.f32 %v1189, %v1245
        %v1280 = vsub.f32 %v1191, %v1245
        %v1281 = vsub.f32 %v1193, %v1248
        %v1282 = vsub.f32 %v1195, %v1248
        %v1283 = vsub.f32 %v1199, %v1251
        %v1284 = vsub.f32 %v1201, %v1251
        %v1285 = vsub.f32 %v1203, %v1254
        %v1286 = vsub.f32 %v1205, %v1254
        %v1287 = vmul.f32 %v1255, 1.442695
        %v1288 = vpow.pop %v1287
        %v1289 = vmul.f32 %v1256, 1.442695
        %v1290 = vpow.pop %v1289
        %v1291 = vmul.f32 %v1257, 1.442695
        %v1292 = vpow.pop %v1291
        %v1293 = vmul.f32 %v1258, 1.442695
        %v1294 = vpow.pop %v1293
        %v1295 = vmul.f32 %v1259, 1.442695
        %v1296 = vpow.pop %v1295
        %v1297 = vmul.f32 %v1260, 1.442695
        %v1298 = vpow.pop %v1297
        %v1299 = vmul.f32 %v1261, 1.442695
        %v1300 = vpow.pop %v1299
        %v1301 = vmul.f32 %v1262, 1.442695
        %v1302 = vpow.pop %v1301
        %v1303 = vmul.f32 %v1263, 1.442695
        %v1304 = vpow.pop %v1303
        %v1305 = vmul.f32 %v1264, 1.442695
        %v1306 = vpow.pop %v1305
        %v1307 = vmul.f32 %v1265, 1.442695
        %v1308 = vpow.pop %v1307
        %v1309 = vmul.f32 %v1266, 1.442695
        %v1310 = vpow.pop %v1309
        %v1311 = vmul.f32 %v1267, 1.442695
        %v1312 = vpow.pop %v1311
        %v1313 = vmul.f32 %v1268, 1.442695
        %v1314 = vpow.pop %v1313
        %v1315 = vmul.f32 %v1269, 1.442695
        %v1316 = vpow.pop %v1315
        %v1317 = vmul.f32 %v1270, 1.442695
        %v1318 = vpow.pop %v1317
        %v1319 = vmul.f32 %v1271, 1.442695
        %v1320 = vpow.pop %v1319
        %v1321 = vmul.f32 %v1272, 1.442695
        %v1322 = vpow.pop %v1321
        %v1323 = vmul.f32 %v1273, 1.442695
        %v1324 = vpow.pop %v1323
        %v1325 = vmul.f32 %v1274, 1.442695
        %v1326 = vpow.pop %v1325
        %v1327 = vmul.f32 %v1275, 1.442695
        %v1328 = vpow.pop %v1327
        %v1329 = vmul.f32 %v1276, 1.442695
        %v1330 = vpow.pop %v1329
        %v1331 = vmul.f32 %v1277, 1.442695
        %v1332 = vpow.pop %v1331
        %v1333 = vmul.f32 %v1278, 1.442695
        %v1334 = vpow.pop %v1333
        %v1335 = vmul.f32 %v1279, 1.442695
        %v1336 = vpow.pop %v1335
        %v1337 = vmul.f32 %v1280, 1.442695
        %v1338 = vpow.pop %v1337
        %v1339 = vmul.f32 %v1281, 1.442695
        %v1340 = vpow.pop %v1339
        %v1341 = vmul.f32 %v1282, 1.442695
        %v1342 = vpow.pop %v1341
        %v1343 = vmul.f32 %v1283, 1.442695
        %v1344 = vpow.pop %v1343
        %v1345 = vmul.f32 %v1284, 1.442695
        %v1346 = vpow.pop %v1345
        %v1347 = vmul.f32 %v1285, 1.442695
        %v1348 = vpow.pop %v1347
        %v1349 = vmul.f32 %v1286, 1.442695
        %v1350 = vpow.pop %v1349
        %v1351 = vadd.f32 %v1288, %v1290
        %1352 = vadd.xlane.f32.xlu0 %v1351
        %v1353 = vpop.xlane.xlu0 %1352
        %v1354 = vadd.f32 %v1292, %v1294
        %1355 = vadd.xlane.f32.xlu0 %v1354
        %v1356 = vpop.xlane.xlu0 %1355
        %v1357 = vadd.f32 %v1296, %v1298
        %1358 = vadd.xlane.f32.xlu0 %v1357
        %v1359 = vpop.xlane.xlu0 %1358
        %v1360 = vadd.f32 %v1300, %v1302
        %1361 = vadd.xlane.f32.xlu0 %v1360
        %v1362 = vpop.xlane.xlu0 %1361
        %v1363 = vadd.f32 %v1304, %v1306
        %1364 = vadd.xlane.f32.xlu0 %v1363
        %v1365 = vpop.xlane.xlu0 %1364
        %v1366 = vadd.f32 %v1308, %v1310
        %1367 = vadd.xlane.f32.xlu0 %v1366
        %v1368 = vpop.xlane.xlu0 %1367
        %v1369 = vadd.f32 %v1312, %v1314
        %1370 = vadd.xlane.f32.xlu0 %v1369
        %v1371 = vpop.xlane.xlu0 %1370
        %v1372 = vadd.f32 %v1316, %v1318
        %1373 = vadd.xlane.f32.xlu0 %v1372
        %v1374 = vpop.xlane.xlu0 %1373
        %v1375 = vadd.f32 %v1320, %v1322
        %1376 = vadd.xlane.f32.xlu0 %v1375
        %v1377 = vpop.xlane.xlu0 %1376
        %v1378 = vadd.f32 %v1324, %v1326
        %1379 = vadd.xlane.f32.xlu0 %v1378
        %v1380 = vpop.xlane.xlu0 %1379
        %v1381 = vadd.f32 %v1328, %v1330
        %1382 = vadd.xlane.f32.xlu0 %v1381
        %v1383 = vpop.xlane.xlu0 %1382
        %v1384 = vadd.f32 %v1332, %v1334
        %1385 = vadd.xlane.f32.xlu0 %v1384
        %v1386 = vpop.xlane.xlu0 %1385
        %v1387 = vadd.f32 %v1336, %v1338
        %1388 = vadd.xlane.f32.xlu0 %v1387
        %v1389 = vpop.xlane.xlu0 %1388
        %v1390 = vadd.f32 %v1340, %v1342
        %1391 = vadd.xlane.f32.xlu0 %v1390
        %v1392 = vpop.xlane.xlu0 %1391
        %v1393 = vadd.f32 %v1344, %v1346
        %1394 = vadd.xlane.f32.xlu0 %v1393
        %v1395 = vpop.xlane.xlu0 %1394
        %v1396 = vadd.f32 %v1348, %v1350
        %1397 = vadd.xlane.f32.xlu0 %v1396
        %v1398 = vpop.xlane.xlu0 %1397
        %v1399 = vrcp.pop %v1353
        %v1400 = vrcp.pop %v1356
        %v1401 = vrcp.pop %v1359
        %v1402 = vrcp.pop %v1362
        %v1403 = vrcp.pop %v1365
        %v1404 = vrcp.pop %v1368
        %v1405 = vrcp.pop %v1371
        %v1406 = vrcp.pop %v1374
        %v1407 = vrcp.pop %v1377
        %v1408 = vrcp.pop %v1380
        %v1409 = vrcp.pop %v1383
        %v1410 = vrcp.pop %v1386
        %v1411 = vrcp.pop %v1389
        %v1412 = vrcp.pop %v1392
        %v1413 = vrcp.pop %v1395
        %v1414 = vrcp.pop %v1398
        %v1415 = vmul.f32 %v1288, %v1399
        %v1416 = vmul.f32 %v1290, %v1399
        %v1417 = vmul.f32 %v1292, %v1400
        %v1418 = vmul.f32 %v1294, %v1400
        %v1419 = vmul.f32 %v1296, %v1401
        %v1420 = vmul.f32 %v1298, %v1401
        %v1421 = vmul.f32 %v1300, %v1402
        %v1422 = vmul.f32 %v1302, %v1402
        %v1423 = vmul.f32 %v1304, %v1403
        %v1424 = vmul.f32 %v1306, %v1403
        %v1425 = vmul.f32 %v1308, %v1404
        %v1426 = vmul.f32 %v1310, %v1404
        %v1427 = vmul.f32 %v1312, %v1405
        %v1428 = vmul.f32 %v1314, %v1405
        %v1429 = vmul.f32 %v1316, %v1406
        %v1430 = vmul.f32 %v1318, %v1406
        %v1431 = vmul.f32 %v1320, %v1407
        %v1432 = vmul.f32 %v1322, %v1407
        %v1433 = vmul.f32 %v1324, %v1408
        %v1434 = vmul.f32 %v1326, %v1408
        %v1435 = vmul.f32 %v1328, %v1409
        %v1436 = vmul.f32 %v1330, %v1409
        %v1437 = vmul.f32 %v1332, %v1410
        %v1438 = vmul.f32 %v1334, %v1410
        %v1439 = vmul.f32 %v1336, %v1411
        %v1440 = vmul.f32 %v1338, %v1411
        %v1441 = vmul.f32 %v1340, %v1412
        %v1442 = vmul.f32 %v1342, %v1412
        %v1443 = vmul.f32 %v1344, %v1413
        %v1444 = vmul.f32 %v1346, %v1413
        %v1445 = vmul.f32 %v1348, %v1414
        %v1446 = vmul.f32 %v1350, %v1414
        %v1447 = vpack.c.bf16 %v1417, %v1415
        %v1448 = vpack.c.bf16 %v1418, %v1416
        %v1449 = vpack.c.bf16 %v1421, %v1419
        %v1450 = vpack.c.bf16 %v1422, %v1420
        %v1451 = vpack.c.bf16 %v1425, %v1423
        %v1452 = vpack.c.bf16 %v1426, %v1424
        %v1453 = vpack.c.bf16 %v1429, %v1427
        %v1454 = vpack.c.bf16 %v1430, %v1428
        %v1455 = vpack.c.bf16 %v1433, %v1431
        %v1456 = vpack.c.bf16 %v1434, %v1432
        %v1457 = vpack.c.bf16 %v1437, %v1435
        %v1458 = vpack.c.bf16 %v1438, %v1436
        %v1459 = vpack.c.bf16 %v1441, %v1439
        %v1460 = vpack.c.bf16 %v1442, %v1440
        %v1461 = vpack.c.bf16 %v1445, %v1443
        %v1462 = vpack.c.bf16 %v1446, %v1444
        %v1463 = vld [vmem:[#allocation3] sm:$0xff]
        %v1464 = vld [vmem:[#allocation3 + $0x8] sm:$0xff]
        %v1465 = vld [vmem:[#allocation3 + $0x10] sm:$0xff]
        %v1466 = vld [vmem:[#allocation3 + $0x18] sm:$0xff]
        %v1467 = vld [vmem:[#allocation3 + $0x20] sm:$0xff]
        %v1468 = vld [vmem:[#allocation3 + $0x28] sm:$0xff]
        %v1469 = vld [vmem:[#allocation3 + $0x30] sm:$0xff]
        %v1470 = vld [vmem:[#allocation3 + $0x38] sm:$0xff]
        %v1471 = vld [vmem:[#allocation3 + $0x40] sm:$0xff]
        %v1472 = vld [vmem:[#allocation3 + $0x48] sm:$0xff]
        %v1473 = vld [vmem:[#allocation3 + $0x50] sm:$0xff]
        %v1474 = vld [vmem:[#allocation3 + $0x58] sm:$0xff]
        %v1475 = vld [vmem:[#allocation3 + $0x60] sm:$0xff]
        %v1476 = vld [vmem:[#allocation3 + $0x68] sm:$0xff]
        %v1477 = vld [vmem:[#allocation3 + $0x70] sm:$0xff]
        %v1478 = vld [vmem:[#allocation3 + $0x78] sm:$0xff]
        %1479 = vmatprep.subr.bf16.mxu0 0
        %1480 = vmatpush1.bf16.msra.mxu0 %v1463
        %1481 = vmatprep.subr.bf16.mxu0 0
        %1482 = vmatpush1.bf16.msra.mxu0 %v1464
        %1483 = vmatprep.subr.bf16.mxu0 0
        %1484 = vmatpush1.bf16.msra.mxu0 %v1465
        %1485 = vmatprep.subr.bf16.mxu0 0
        %1486 = vmatpush1.bf16.msra.mxu0 %v1466
        %1487 = vmatprep.subr.bf16.mxu0 0
        %1488 = vmatpush1.bf16.msra.mxu0 %v1467
        %1489 = vmatprep.subr.bf16.mxu0 0
        %1490 = vmatpush1.bf16.msra.mxu0 %v1468
        %1491 = vmatprep.subr.bf16.mxu0 0
        %1492 = vmatpush1.bf16.msra.mxu0 %v1469
        %1493 = vmatprep.subr.bf16.mxu0 0
        %1494 = vmatpush1.bf16.msra.mxu0 %v1470
        %1495 = vmatprep.subr.bf16.mxu0 0
        %1496 = vmatpush1.bf16.msra.mxu0 %v1471
        %1497 = vmatprep.subr.bf16.mxu0 0
        %1498 = vmatpush1.bf16.msra.mxu0 %v1472
        %1499 = vmatprep.subr.bf16.mxu0 0
        %1500 = vmatpush1.bf16.msra.mxu0 %v1473
        %1501 = vmatprep.subr.bf16.mxu0 0
        %1502 = vmatpush1.bf16.msra.mxu0 %v1474
        %1503 = vmatprep.subr.bf16.mxu0 0
        %1504 = vmatpush1.bf16.msra.mxu0 %v1475
        %1505 = vmatprep.subr.bf16.mxu0 0
        %1506 = vmatpush1.bf16.msra.mxu0 %v1476
        %1507 = vmatprep.subr.bf16.mxu0 0
        %1508 = vmatpush1.bf16.msra.mxu0 %v1477
        %1509 = vmatprep.subr.bf16.mxu0 0
        %1510 = vmatpush1.bf16.msra.mxu0 %v1478
        %1511 = vmatprep.mubr.bf16.mxu0 %v1448
        %1512 = vmatmul.mubr.bf16.gmra.mrb[0].mxu0 %v1447
        %v1513 = vpop.f32.mrb[0].mxu0
        %v1514 = vadd.f32 0.0, %v1513
        %v1515 = vpop.f32.mrb[0].mxu0
        %v1516 = vpop.f32.mrb[0].mxu0
        %v1517 = vadd.f32 0.0, %v1516
        %v1518 = vpop.f32.mrb[0].mxu0
        %1519 = vmatprep.mubr.bf16.mxu0 %v1450
        %1520 = vmatmul.mubr.bf16.gmra.mrb[0].mxu0 %v1449
        %v1521 = vpop.f32.mrb[0].mxu0
        %v1522 = vadd.f32 0.0, %v1521
        %v1523 = vpop.f32.mrb[0].mxu0
        %v1524 = vpop.f32.mrb[0].mxu0
        %v1525 = vadd.f32 0.0, %v1524
        %v1526 = vpop.f32.mrb[0].mxu0
        %1527 = vmatprep.mubr.bf16.mxu0 %v1452
        %1528 = vmatmul.mubr.bf16.gmra.mrb[0].mxu0 %v1451
        %v1529 = vpop.f32.mrb[0].mxu0
        %v1530 = vadd.f32 0.0, %v1529
        %v1531 = vpop.f32.mrb[0].mxu0
        %v1532 = vpop.f32.mrb[0].mxu0
        %v1533 = vadd.f32 0.0, %v1532
        %v1534 = vpop.f32.mrb[0].mxu0
        %1535 = vmatprep.mubr.bf16.mxu0 %v1454
        %1536 = vmatmul.mubr.bf16.gmra.mrb[0].mxu0 %v1453
        %v1537 = vpop.f32.mrb[0].mxu0
        %v1538 = vadd.f32 0.0, %v1537
        %v1539 = vpop.f32.mrb[0].mxu0
        %v1540 = vpop.f32.mrb[0].mxu0
        %v1541 = vadd.f32 0.0, %v1540
        %v1542 = vpop.f32.mrb[0].mxu0
        %1543 = vmatprep.mubr.bf16.mxu0 %v1456
        %1544 = vmatmul.mubr.bf16.gmra.mrb[0].mxu0 %v1455
        %v1545 = vpop.f32.mrb[0].mxu0
        %v1546 = vadd.f32 0.0, %v1545
        %v1547 = vpop.f32.mrb[0].mxu0
        %v1548 = vpop.f32.mrb[0].mxu0
        %v1549 = vadd.f32 0.0, %v1548
        %v1550 = vpop.f32.mrb[0].mxu0
        %1551 = vmatprep.mubr.bf16.mxu0 %v1458
        %1552 = vmatmul.mubr.bf16.gmra.mrb[0].mxu0 %v1457
        %v1553 = vpop.f32.mrb[0].mxu0
        %v1554 = vadd.f32 0.0, %v1553
        %v1555 = vpop.f32.mrb[0].mxu0
        %v1556 = vpop.f32.mrb[0].mxu0
        %v1557 = vadd.f32 0.0, %v1556
        %v1558 = vpop.f32.mrb[0].mxu0
        %1559 = vmatprep.mubr.bf16.mxu0 %v1460
        %1560 = vmatmul.mubr.bf16.gmra.mrb[0].mxu0 %v1459
        %v1561 = vpop.f32.mrb[0].mxu0
        %v1562 = vadd.f32 0.0, %v1561
        %v1563 = vpop.f32.mrb[0].mxu0
        %v1564 = vpop.f32.mrb[0].mxu0
        %v1565 = vadd.f32 0.0, %v1564
        %v1566 = vpop.f32.mrb[0].mxu0
        %1567 = vmatprep.mubr.bf16.mxu0 %v1462
        %1568 = vmatmul.mubr.bf16.gmra.mrb[0].mxu0 %v1461
        %v1569 = vpop.f32.mrb[0].mxu0
        %v1570 = vadd.f32 0.0, %v1569
        %v1571 = vpop.f32.mrb[0].mxu0
        %v1572 = vpop.f32.mrb[0].mxu0
        %v1573 = vadd.f32 0.0, %v1572
        %v1574 = vpop.f32.mrb[0].mxu0
        %1575 = vdwg.mxu0
        %1576 = vst [vmem:[%s284] sm:$0xff] %v1514
        %1577 = vst [vmem:[%s284 + $0x8] sm:$0xff] %v1517
        %1578 = vst [vmem:[%s284 + $0x10] sm:$0xff] %v1522
        %1579 = vst [vmem:[%s284 + $0x18] sm:$0xff] %v1525
        %1580 = vst [vmem:[%s284 + $0x20] sm:$0xff] %v1530
        %1581 = vst [vmem:[%s284 + $0x28] sm:$0xff] %v1533
        %1582 = vst [vmem:[%s284 + $0x30] sm:$0xff] %v1538
        %1583 = vst [vmem:[%s284 + $0x38] sm:$0xff] %v1541
        %1584 = vst [vmem:[%s284 + $0x40] sm:$0xff] %v1546
        %1585 = vst [vmem:[%s284 + $0x48] sm:$0xff] %v1549
        %1586 = vst [vmem:[%s284 + $0x50] sm:$0xff] %v1554
        %1587 = vst [vmem:[%s284 + $0x58] sm:$0xff] %v1557
        %1588 = vst [vmem:[%s284 + $0x60] sm:$0xff] %v1562
        %1589 = vst [vmem:[%s284 + $0x68] sm:$0xff] %v1565
        %1590 = vst [vmem:[%s284 + $0x70] sm:$0xff] %v1570
        %1591 = vst [vmem:[%s284 + $0x78] sm:$0xff] %v1573
        %s1592 = sand.u32 %s180, 1
        %s1593 = scalar_lea.sflag [#allocation5], %s1592
        %s1594 = sand.u32 %s180, 1
        %s1595 = smul.addr %s1594, 128
        %s1596 = scalar_lea.vmem [#allocation4], %s1595
        // Predicated region
        $region49: #{tpu_custom_call.1} parent=43 // pred_check
          %p1597 = pneg %p190
        $region50: #{tpu_custom_call.1} parent=43 // pred_check_branch
          %1599 = sbr.rel (%p1597) target = $region52
        $region51: #{tpu_custom_call.1} parent=43 // pred_region
          %s1600 = smul.u32 16, %s25
          %s1602 = ssub.s32 2048, 2048
          %1603 = vsyncadd %s1593, %s1602
          %s1604 = smul.addr %s24, 32
          %s1605 = sadd.s32 %s1600, %s1604
          %s1606 = smul.addr %s1605, 128
          %s1607 = scalar_lea.hbm %s6, %s1606
          %s1608 = sshll.u32 %s1596, 4
          %s1609 = int_to_ptr.vmem [resolvable:$true] %s1608
          %1614 = dma.vmem_to_hbm [thread:$0]  %s1609, 2048, %s1607, %s1593, 128, 128, 8
        $region52: #{tpu_custom_call.1} parent=43 // pred_fallthru
          _
      $region44: #{tpu_custom_call.1} parent=5 // pred_fallthru
        _
      %p1615 = scmp.le.s32.totalorder 2, %s15
      // Predicated region
      $region53: #{tpu_custom_call.1} parent=5 // pred_check
        %p1616 = pneg %p1615
      $region54: #{tpu_custom_call.1} parent=5 // pred_check_branch
        %1618 = sbr.rel (%p1616) target = $region56
      $region55: #{tpu_custom_call.1} parent=5 // pred_region
        %s1619 = ssub.s32 %s15, 2
        // Predicated region
        $region57: #{tpu_custom_call.1} parent=55 // pred_check
          %p1620 = pneg %p196
        $region58: #{tpu_custom_call.1} parent=55 // pred_check_branch
          %1622 = sbr.rel (%p1620) target = $region60
        $region59: #{tpu_custom_call.1} parent=55 // pred_region
          %s1623 = sand.u32 %s181, 1
          %s1624 = scalar_lea.sflag [#allocation5], %s1623
          %s1625 = sand.u32 %s181, 1
          %s1626 = smul.addr %s1625, 128
          %s1627 = scalar_lea.vmem [#allocation4], %s1626
          %1628 = dma.done %s1624, 2048
        $region60: #{tpu_custom_call.1} parent=55 // pred_fallthru
          _
      $region56: #{tpu_custom_call.1} parent=5 // pred_fallthru
        _
    $region6: #{tpu_custom_call.1} parent=1 // loop_footer
      %s19 = sadd.s32 1, %s15
    $region7: #{tpu_custom_call.1} parent=1 // loop_footer_branch
      %14 = sbr.rel target = $region3
    $region8: #{tpu_custom_call.1} parent=1 // loop_exit
      _
    %1629 = vsyncpa [#allocation5], 1
    %s1630 = scalar_lea.sflag [#allocation5], 1
    %1631 = vsyncpa %s1630, 1

</llo_original>
